<compile_context>
chip_gen: v7x
topology: tpu7x:2x2x1
jax: 0.10.0
libtpu: 0.0.40
codegen_flags: <defaults>
</compile_context>

<pallas_src>
import functools

import jax
import jax.numpy as jnp
from jax.experimental import pallas as pl
from jax.experimental.pallas import tpu as pltpu

BN_EPS = 1e-5
LANE = 128


def _round_up(x, m):
    return (x + m - 1) // m * m


def _vmem_limit_bytes():
    # v5e/v6e: 128 MiB physical VMEM, v7x: 64 MiB — derive the scoped limit
    # from the chip instead of hard-coding one number for every generation.
    try:
        cap = pltpu.get_tpu_info().vmem_capacity_bytes
        return int(min(cap * 3 // 4, 96 * 1024 * 1024))
    except Exception:
        return 64 * 1024 * 1024


def _pick_row_tile(ho, wo):
    """Largest divisor of ho giving >=2 row tiles and a >=64-row GEMM M/tile."""
    for t in range(ho, 0, -1):
        if ho % t == 0 and ho // t >= 2 and t * wo >= 64:
            return t
    for t in range(ho // 2, 0, -1):
        if ho % t == 0:
            return t
    return ho


# -----------------------------------------------------------------------------
# Pallas kernels
# -----------------------------------------------------------------------------
def _matmul_bn_kernel(p_ref, w_ref, s_ref, b_ref, o_ref, *, relu):
    """One M-tile of: (M,K)@(K,Co) GEMM + folded-BN scale/bias (+ReLU)."""
    acc = jnp.dot(p_ref[...], w_ref[...], preferred_element_type=jnp.float32)
    acc = acc * s_ref[...] + b_ref[...]
    if relu:
        acc = jnp.maximum(acc, 0.0)
    o_ref[...] = acc.astype(o_ref.dtype)


def _conv3x3_s1_bn_kernel(x_ref, w_ref, s_ref, b_ref, *rest, relu, add_residual):
    """One output row-tile of a stride-1 3x3 conv fused with BN (+res) (+ReLU).

    x_ref : (1, Hp, Wp, C)   bf16 padded image (resident across row tiles)
    w_ref : (3, 3*C, Co)     bf16, kh-major / (kw, c) rows
    s/b   : (1, Co)          f32 folded BN scale / bias
    r_ref : (1, TH, Wo, Co)  bf16 residual (only if add_residual)
    o_ref : (1, TH, Wo, Co)
    """
    if add_residual:
        r_ref, o_ref = rest
    else:
        (o_ref,) = rest
        r_ref = None

    _, TH, Wo, Co = o_ref.shape
    C = x_ref.shape[3]
    row0 = pl.program_id(1) * TH

    acc = jnp.zeros((TH * Wo, Co), jnp.float32)
    for kh in range(3):
        rows = x_ref[0, pl.ds(row0 + kh, TH), :, :]            # (TH, Wp, C)
        # kw-fold: one (TH*Wo, 3C) slab per kh, single K=3C matmul.
        slab = jnp.concatenate([rows[:, kw:kw + Wo, :] for kw in range(3)],
                               axis=-1).reshape(TH * Wo, 3 * C)
        acc = acc + jnp.dot(slab, w_ref[kh],
                            preferred_element_type=jnp.float32)

    acc = acc * s_ref[...] + b_ref[...]
    if add_residual:
        acc = acc + r_ref[0].reshape(TH * Wo, Co).astype(jnp.float32)
    if relu:
        acc = jnp.maximum(acc, 0.0)
    o_ref[0] = acc.reshape(TH, Wo, Co).astype(o_ref.dtype)


def _conv3x3_s2_bn_kernel(p00, p01, p10, p11, w_ref, s_ref, b_ref, o_ref, *,
                          relu):
    """One output row-tile of a stride-2 3x3 conv (phase-split) + BN (+ReLU).

    p{bh}{bw} : (1, PH, PW, C)  bf16, x_pad[:, bh::2, bw::2, :]
    w_ref     : (3, 3*C, Co)    bf16, kh-major / (kw, c) rows
    o_ref     : (1, TH, Wo, Co)
    """
    _, TH, Wo, Co = o_ref.shape
    C = p00.shape[3]
    row0 = pl.program_id(1) * TH
    row_phase = ((p00, p01), (p10, p11))        # indexed [kh & 1][kw & 1]

    acc = jnp.zeros((TH * Wo, Co), jnp.float32)
    for kh in range(3):
        bh, ah = kh & 1, kh >> 1
        even = row_phase[bh][0][0, pl.ds(row0 + ah, TH), :, :]   # kw = 0, 2
        odd = row_phase[bh][1][0, pl.ds(row0 + ah, TH), :, :]    # kw = 1
        slab = jnp.concatenate(
            [even[:, 0:Wo, :], odd[:, 0:Wo, :], even[:, 1:1 + Wo, :]],
            axis=-1).reshape(TH * Wo, 3 * C)
        acc = acc + jnp.dot(slab, w_ref[kh],
                            preferred_element_type=jnp.float32)

    acc = acc * s_ref[...] + b_ref[...]
    if relu:
        acc = jnp.maximum(acc, 0.0)
    o_ref[0] = acc.reshape(TH, Wo, Co).astype(o_ref.dtype)


# -----------------------------------------------------------------------------
# pallas_call wrappers
# -----------------------------------------------------------------------------
def matmul_bn_pallas(xs, w, scale, bias, *, relu, out_dtype):
    """M-tiled GEMM + BN epilogue (used for the 1x1 projection shortcut)."""
    M, K = xs.shape
    Co = w.shape[1]
    # 256-aligned M tiles (v6e/v7x MXU granularity), sized to stay well inside
    # v7x's 64 MiB VMEM for the deepest 1x1 shortcut shapes.
    tile_m = min(1024, _round_up(M, 256))
    Mp = _round_up(M, tile_m)
    if Mp != M:
        xs = jnp.pad(xs, ((0, Mp - M), (0, 0)))

    out = pl.pallas_call(
        functools.partial(_matmul_bn_kernel, relu=relu),
        out_shape=jax.ShapeDtypeStruct((Mp, Co), out_dtype),
        grid=(Mp // tile_m,),
        in_specs=[
            pl.BlockSpec((tile_m, K), lambda i: (i, 0)),     # streamed
            pl.BlockSpec((K, Co), lambda i: (0, 0)),         # resident weight
            pl.BlockSpec((1, Co), lambda i: (0, 0)),
            pl.BlockSpec((1, Co), lambda i: (0, 0)),
        ],
        out_specs=pl.BlockSpec((tile_m, Co), lambda i: (i, 0)),
        compiler_params=pltpu.CompilerParams(
            dimension_semantics=("parallel",),
            vmem_limit_bytes=_vmem_limit_bytes()),
        cost_estimate=pl.CostEstimate(
            flops=2 * Mp * K * Co, transcendentals=0,
            bytes_accessed=Mp * K * 2 + K * Co * 2
            + Mp * Co * jnp.dtype(out_dtype).itemsize),
    )(xs, w, scale, bias)
    return out[:M]


def conv3x3_s1_bn_pallas(x_padded, w3, scale, bias, residual, *, relu,
                         out_dtype):
    """Direct stride-1 3x3 conv, grid over (batch, output-row tiles)."""
    N, Hp, Wp, C = x_padded.shape
    Ho, Wo = Hp - 2, Wp - 2
    Co = w3.shape[-1]
    th = _pick_row_tile(Ho, Wo)
    add_residual = residual is not None

    in_specs = [
        # Full padded image: block index is constant in r, so the pipeline
        # fetches it once per image and it stays VMEM-resident across row
        # tiles.  TODO(synk): switch to a pl.Element-indexed (th+2)-row halo
        # block to shrink per-step VMEM on very large feature maps.
        pl.BlockSpec((1, Hp, Wp, C), lambda n, r: (n, 0, 0, 0)),
        pl.BlockSpec((3, 3 * C, Co), lambda n, r: (0, 0, 0)),  # resident weight
        pl.BlockSpec((1, Co), lambda n, r: (0, 0)),
        pl.BlockSpec((1, Co), lambda n, r: (0, 0)),
    ]
    args = [x_padded, w3, scale, bias]
    if add_residual:
        in_specs.append(pl.BlockSpec((1, th, Wo, Co),
                                     lambda n, r: (n, r, 0, 0)))
        args.append(residual)

    return pl.pallas_call(
        functools.partial(_conv3x3_s1_bn_kernel, relu=relu,
                          add_residual=add_residual),
        out_shape=jax.ShapeDtypeStruct((N, Ho, Wo, Co), out_dtype),
        grid=(N, Ho // th),
        in_specs=in_specs,
        out_specs=pl.BlockSpec((1, th, Wo, Co), lambda n, r: (n, r, 0, 0)),
        compiler_params=pltpu.CompilerParams(
            dimension_semantics=("parallel", "parallel"),
            vmem_limit_bytes=_vmem_limit_bytes()),
        cost_estimate=pl.CostEstimate(
            flops=2 * N * Ho * Wo * 9 * C * Co, transcendentals=0,
            bytes_accessed=N * Hp * Wp * C * 2 + 9 * C * Co * 2
            + (N * Ho * Wo * Co * 2 if add_residual else 0)
            + N * Ho * Wo * Co * jnp.dtype(out_dtype).itemsize),
    )(*args)


def conv3x3_s2_bn_pallas(x_padded, w3, scale, bias, *, relu, out_dtype):
    """Direct stride-2 3x3 conv via 4 stride-1 phase sub-images (no im2col)."""
    N, Hp, Wp, C = x_padded.shape
    Ho = (Hp - 3) // 2 + 1
    Wo = (Wp - 3) // 2 + 1
    Co = w3.shape[-1]
    th = _pick_row_tile(Ho, Wo)

    # Phase split in plain JAX: total traffic ~= one pass over the input.
    phases = [x_padded[:, bh::2, bw::2, :] for bh in (0, 1) for bw in (0, 1)]
    phase_specs = [pl.BlockSpec((1,) + p.shape[1:], lambda n, r: (n, 0, 0, 0))
                   for p in phases]

    return pl.pallas_call(
        functools.partial(_conv3x3_s2_bn_kernel, relu=relu),
        out_shape=jax.ShapeDtypeStruct((N, Ho, Wo, Co), out_dtype),
        grid=(N, Ho // th),
        in_specs=phase_specs + [
            pl.BlockSpec((3, 3 * C, Co), lambda n, r: (0, 0, 0)),
            pl.BlockSpec((1, Co), lambda n, r: (0, 0)),
            pl.BlockSpec((1, Co), lambda n, r: (0, 0)),
        ],
        out_specs=pl.BlockSpec((1, th, Wo, Co), lambda n, r: (n, r, 0, 0)),
        compiler_params=pltpu.CompilerParams(
            dimension_semantics=("parallel", "parallel"),
            vmem_limit_bytes=_vmem_limit_bytes()),
        cost_estimate=pl.CostEstimate(
            flops=2 * N * Ho * Wo * 9 * C * Co, transcendentals=0,
            bytes_accessed=N * Hp * Wp * C * 2 + 9 * C * Co * 2
            + N * Ho * Wo * Co * jnp.dtype(out_dtype).itemsize),
    )(*phases, w3, scale, bias)


# -----------------------------------------------------------------------------
# Plain-JAX glue
# -----------------------------------------------------------------------------
def _pad_last(a, target):
    pad = target - a.shape[-1]
    if pad == 0:
        return a
    return jnp.pad(a, [(0, 0)] * (a.ndim - 1) + [(0, pad)])


def _pad_weight(w, cp_in, cp_out):
    # HWIO weight, zero-pad both channel axes to lane multiples.
    return jnp.pad(w, ((0, 0), (0, 0),
                       (0, cp_in - w.shape[2]), (0, cp_out - w.shape[3])))


def fold_bn(gamma, beta, mean, var, cp_out):
    scale = gamma / jnp.sqrt(var + BN_EPS)
    bias = beta - mean * scale
    scale = jnp.pad(scale, (0, cp_out - scale.shape[0]), constant_values=1.0)
    bias = jnp.pad(bias, (0, cp_out - bias.shape[0]))
    return scale[None, :].astype(jnp.float32), bias[None, :].astype(jnp.float32)


def init_params(key, cin, cout, stride):
    ks = jax.random.split(key, 8)

    def bn_params(k):
        k1, k2, k3, k4 = jax.random.split(k, 4)
        gamma = jax.random.uniform(k1, (cout,), minval=0.5, maxval=1.5)
        beta = 0.1 * jax.random.normal(k2, (cout,))
        mean = 0.1 * jax.random.normal(k3, (cout,))
        var = jax.random.uniform(k4, (cout,), minval=0.5, maxval=1.5)
        return (gamma.astype(jnp.float32), beta.astype(jnp.float32),
                mean.astype(jnp.float32), var.astype(jnp.float32))

    params = {
        "w1": (0.1 * jax.random.normal(ks[0], (3, 3, cin, cout))).astype(jnp.float32),  # HWIO
        "w2": (0.1 * jax.random.normal(ks[1], (3, 3, cout, cout))).astype(jnp.float32),
        "bn1": bn_params(ks[2]),
        "bn2": bn_params(ks[3]),
    }
    if stride != 1 or cin != cout:
        params["w_sc"] = (0.1 * jax.random.normal(ks[4], (1, 1, cin, cout))).astype(jnp.float32)
        params["bn_sc"] = bn_params(ks[5])
    return params


def residual_block_nhwc(x_nhwc, params, stride):
    """NHWC entry point (use this when chaining blocks to avoid transposes)."""
    assert stride in (1, 2), "ResNet basic blocks only use stride 1 or 2"
    cin = x_nhwc.shape[-1]
    cout = params["w1"].shape[3]
    cp_in = _round_up(cin, LANE)
    cp_out = _round_up(cout, LANE)

    # Single input copy: pad channels to a lane multiple directly in bf16.
    x_bf16 = _pad_last(x_nhwc, cp_in).astype(jnp.bfloat16)

    w1 = _pad_weight(params["w1"], cp_in, cp_out).astype(jnp.bfloat16)
    w2 = _pad_weight(params["w2"], cp_out, cp_out).astype(jnp.bfloat16)
    s1, b1 = fold_bn(*params["bn1"], cp_out)
    s2, b2 = fold_bn(*params["bn2"], cp_out)

    N, H, W, _ = x_bf16.shape
    Ho = (H + 2 - 3) // stride + 1
    Wo = (W + 2 - 3) // stride + 1

    xp = jnp.pad(x_bf16, ((0, 0), (1, 1), (1, 1), (0, 0)))   # spatial pad

    # ---- left branch: conv3x3(stride) + BN1 + ReLU (y1 kept in bf16) ----
    if stride == 1:
        y1 = conv3x3_s1_bn_pallas(xp, w1.reshape(3, 3 * cp_in, cp_out), s1, b1,
                                  residual=None, relu=True,
                                  out_dtype=jnp.bfloat16)
    else:
        y1 = conv3x3_s2_bn_pallas(xp, w1.reshape(3, 3 * cp_in, cp_out), s1, b1,
                                  relu=True, out_dtype=jnp.bfloat16)

    # ---- shortcut branch (residual travels as bf16, add stays f32) ----
    if stride != 1 or cin != cout:
        w_sc = _pad_weight(params["w_sc"], cp_in, cp_out).astype(jnp.bfloat16)
        ssc, bsc = fold_bn(*params["bn_sc"], cp_out)
        xs = x_bf16[:, ::stride, ::stride, :].reshape(-1, cp_in)   # 1x1 conv = subsample+GEMM
        sc = matmul_bn_pallas(xs, w_sc.reshape(cp_in, cp_out), ssc, bsc,
                              relu=False, out_dtype=jnp.bfloat16)
        sc = sc.reshape(N, Ho, Wo, cp_out)
    else:
        sc = x_bf16   # identity shortcut (cp_in == cp_out here)

    # ---- conv3x3(1) + BN2 + residual add + final ReLU, fully fused ----
    y1p = jnp.pad(y1, ((0, 0), (1, 1), (1, 1), (0, 0)))
    out = conv3x3_s1_bn_pallas(y1p, w2.reshape(3, 3 * cp_out, cp_out), s2, b2,
                               residual=sc, relu=True, out_dtype=jnp.float32)
    # TODO(synk): when chaining blocks, keep the channel-padded NHWC layout and
    # skip this strip + the next block's re-pad.
    return out[..., :cout]


def residual_block(x_nchw, params, stride):
    # NCHW wrapper matching the PyTorch interface; chain residual_block_nhwc
    # directly inside a network to avoid these HBM transposes.
    x = jnp.transpose(x_nchw, (0, 2, 3, 1))
    out = residual_block_nhwc(x, params, stride)
    return jnp.transpose(out, (0, 3, 1, 2))


# -----------------------------------------------------------------------------
# Pure-JAX reference (conv_dtype=bf16 mirrors the kernel's MXU precision and
# the bf16 y1 / bf16 residual storage)
# -----------------------------------------------------------------------------
def ref_block(x_nchw, params, stride, conv_dtype=jnp.float32):
    x = jnp.transpose(x_nchw, (0, 2, 3, 1)).astype(jnp.float32)

    def conv(v, w, s, pad):
        return jax.lax.conv_general_dilated(
            v.astype(conv_dtype), w.astype(conv_dtype), (s, s),
            [(pad, pad), (pad, pad)],
            dimension_numbers=("NHWC", "HWIO", "NHWC"),
            preferred_element_type=jnp.float32)

    def bn(v, p):
        g, b, m, va = p
        return (v - m) / jnp.sqrt(va + BN_EPS) * g + b

    cin = x.shape[-1]
    cout = params["w1"].shape[-1]
    y = jax.nn.relu(bn(conv(x, params["w1"], stride, 1), params["bn1"]))
    y = y.astype(conv_dtype).astype(jnp.float32)     # kernel stores y1 as bf16
    y = bn(conv(y, params["w2"], 1, 1), params["bn2"])
    if stride != 1 or cin != cout:
        sc = bn(conv(x, params["w_sc"], stride, 0), params["bn_sc"])
    else:
        sc = x
    sc = sc.astype(conv_dtype).astype(jnp.float32)   # kernel's bf16 residual
    return jnp.transpose(jax.nn.relu(y + sc), (0, 3, 1, 2))


if __name__ == "__main__":
    key = jax.random.PRNGKey(0)
    configs = [
        # (N, Cin, H, W, Cout, stride)
        (2, 4, 16, 16, 8, 2),   # projection shortcut, strided conv1 (phase-split)
        (2, 8, 16, 16, 8, 1),   # identity shortcut, both convs via s1 kernel
    ]
    for idx, (N, CIN, H, W, COUT, STRIDE) in enumerate(configs):
        kx, kp = jax.random.split(jax.random.fold_in(key, idx))
        x = jax.random.normal(kx, (N, CIN, H, W), dtype=jnp.float32)  # NCHW
        params = init_params(kp, CIN, COUT, STRIDE)

        out = jax.block_until_ready(residual_block(x, params, STRIDE))
        Ho = (H + 2 - 3) // STRIDE + 1
        assert out.shape == (N, COUT, Ho, Ho), out.shape

        # Tight check vs a reference that models the kernel's bf16 precision.
        ref_bf16 = jax.block_until_ready(ref_block(x, params, STRIDE, jnp.bfloat16))
        assert jnp.allclose(out, ref_bf16, atol=1e-2, rtol=1e-2), \
            float(jnp.max(jnp.abs(out - ref_bf16)))
        # Loose sanity check vs the pure-f32 reference (bf16 operand rounding).
        ref_f32 = jax.block_until_ready(ref_block(x, params, STRIDE))
        assert jnp.allclose(out, ref_f32, atol=1e-1, rtol=1e-1), \
            float(jnp.max(jnp.abs(out - ref_f32)))

    print("KERNEL_OK")
</pallas_src>

<mosaic_0001>
module attributes {stable_mosaic.version = 11 : i64} {
  func.func @_conv3x3_s2_bn_kernel(%arg0: i32, %arg1: i32, %arg2: memref<1x9x9x128xbf16, #tpu.memory_space<vmem>>, %arg3: memref<1x9x9x128xbf16, #tpu.memory_space<vmem>>, %arg4: memref<1x9x9x128xbf16, #tpu.memory_space<vmem>>, %arg5: memref<1x9x9x128xbf16, #tpu.memory_space<vmem>>, %arg6: memref<3x384x128xbf16, #tpu.memory_space<vmem>>, %arg7: memref<1x128xf32, #tpu.memory_space<vmem>>, %arg8: memref<1x128xf32, #tpu.memory_space<vmem>>, %arg9: memref<1x4x8x128xbf16, #tpu.memory_space<vmem>>) attributes {dimension_semantics = [#tpu.dimension_semantics<parallel>, #tpu.dimension_semantics<parallel>], iteration_bounds = array<i64: 2, 2>, scalar_prefetch = 0 : i64, scratch_operands = 0 : i64, tpu.core_type = #tpu.core_type<tc>, window_params = [{transform_indices = @transform_0, window_bounds = array<i64: 1, 9, 9, 128>}, {transform_indices = @transform_1, window_bounds = array<i64: 1, 9, 9, 128>}, {transform_indices = @transform_2, window_bounds = array<i64: 1, 9, 9, 128>}, {transform_indices = @transform_3, window_bounds = array<i64: 1, 9, 9, 128>}, {pipeline_mode = #tpu.pipeline_mode<synchronous>, transform_indices = @transform_4, window_bounds = array<i64: 3, 384, 128>}, {pipeline_mode = #tpu.pipeline_mode<synchronous>, transform_indices = @transform_5, window_bounds = array<i64: 1, 128>}, {pipeline_mode = #tpu.pipeline_mode<synchronous>, transform_indices = @transform_6, window_bounds = array<i64: 1, 128>}, {transform_indices = @transform_7, window_bounds = array<i64: 1, 4, 8, 128>}]} {
    %c4_i32 = arith.constant 4 : i32
    %0 = arith.muli %arg1, %c4_i32 : i32
    %cst = arith.constant 0.000000e+00 : f32
    %1 = vector.broadcast %cst : f32 to vector<32x128xf32>
    %c0_i32 = arith.constant 0 : i32
    %2 = arith.addi %0, %c0_i32 : i32
    %c0 = arith.constant 0 : index
    %3 = arith.index_cast %2 : i32 to index
    %c0_0 = arith.constant 0 : index
    %c0_1 = arith.constant 0 : index
    %4 = vector.load %arg2[%c0, %3, %c0_0, %c0_1] : memref<1x9x9x128xbf16, #tpu.memory_space<vmem>>, vector<1x4x9x128xbf16>
    %5 = vector.shape_cast %4 : vector<1x4x9x128xbf16> to vector<4x9x128xbf16>
    %c0_i32_2 = arith.constant 0 : i32
    %6 = arith.addi %0, %c0_i32_2 : i32
    %c0_3 = arith.constant 0 : index
    %7 = arith.index_cast %6 : i32 to index
    %c0_4 = arith.constant 0 : index
    %c0_5 = arith.constant 0 : index
    %8 = vector.load %arg3[%c0_3, %7, %c0_4, %c0_5] : memref<1x9x9x128xbf16, #tpu.memory_space<vmem>>, vector<1x4x9x128xbf16>
    %9 = vector.shape_cast %8 : vector<1x4x9x128xbf16> to vector<4x9x128xbf16>
    %10 = vector.extract_strided_slice %5 {offsets = [0, 0, 0], sizes = [4, 8, 128], strides = [1, 1, 1]} : vector<4x9x128xbf16> to vector<4x8x128xbf16>
    %11 = vector.extract_strided_slice %9 {offsets = [0, 0, 0], sizes = [4, 8, 128], strides = [1, 1, 1]} : vector<4x9x128xbf16> to vector<4x8x128xbf16>
    %12 = vector.extract_strided_slice %5 {offsets = [0, 1, 0], sizes = [4, 8, 128], strides = [1, 1, 1]} : vector<4x9x128xbf16> to vector<4x8x128xbf16>
    %13 = tpu.concatenate %10, %11, %12 in 2 : vector<4x8x128xbf16>, vector<4x8x128xbf16>, vector<4x8x128xbf16> -> vector<4x8x384xbf16>
    %14 = vector.shape_cast %13 : vector<4x8x384xbf16> to vector<32x384xbf16>
    %c0_6 = arith.constant 0 : index
    %c0_7 = arith.constant 0 : index
    %c0_8 = arith.constant 0 : index
    %15 = vector.load %arg6[%c0_6, %c0_7, %c0_8] : memref<3x384x128xbf16, #tpu.memory_space<vmem>>, vector<1x384x128xbf16>
    %16 = vector.shape_cast %15 : vector<1x384x128xbf16> to vector<384x128xbf16>
    %cst_9 = arith.constant dense<0.000000e+00> : vector<32x128xf32>
    %17 = tpu.matmul %14, %16, %cst_9 {dimension_numbers = #tpu.dot_dimension_numbers<[1], [0], [0], [1], [0, 0, 1, 1], [], []>} : vector<32x384xbf16>, vector<384x128xbf16>, vector<32x128xf32> -> vector<32x128xf32>
    %18 = arith.addf %1, %17 : vector<32x128xf32>
    %c0_i32_10 = arith.constant 0 : i32
    %19 = arith.addi %0, %c0_i32_10 : i32
    %c0_11 = arith.constant 0 : index
    %20 = arith.index_cast %19 : i32 to index
    %c0_12 = arith.constant 0 : index
    %c0_13 = arith.constant 0 : index
    %21 = vector.load %arg4[%c0_11, %20, %c0_12, %c0_13] : memref<1x9x9x128xbf16, #tpu.memory_space<vmem>>, vector<1x4x9x128xbf16>
    %22 = vector.shape_cast %21 : vector<1x4x9x128xbf16> to vector<4x9x128xbf16>
    %c0_i32_14 = arith.constant 0 : i32
    %23 = arith.addi %0, %c0_i32_14 : i32
    %c0_15 = arith.constant 0 : index
    %24 = arith.index_cast %23 : i32 to index
    %c0_16 = arith.constant 0 : index
    %c0_17 = arith.constant 0 : index
    %25 = vector.load %arg5[%c0_15, %24, %c0_16, %c0_17] : memref<1x9x9x128xbf16, #tpu.memory_space<vmem>>, vector<1x4x9x128xbf16>
    %26 = vector.shape_cast %25 : vector<1x4x9x128xbf16> to vector<4x9x128xbf16>
    %27 = vector.extract_strided_slice %22 {offsets = [0, 0, 0], sizes = [4, 8, 128], strides = [1, 1, 1]} : vector<4x9x128xbf16> to vector<4x8x128xbf16>
    %28 = vector.extract_strided_slice %26 {offsets = [0, 0, 0], sizes = [4, 8, 128], strides = [1, 1, 1]} : vector<4x9x128xbf16> to vector<4x8x128xbf16>
    %29 = vector.extract_strided_slice %22 {offsets = [0, 1, 0], sizes = [4, 8, 128], strides = [1, 1, 1]} : vector<4x9x128xbf16> to vector<4x8x128xbf16>
    %30 = tpu.concatenate %27, %28, %29 in 2 : vector<4x8x128xbf16>, vector<4x8x128xbf16>, vector<4x8x128xbf16> -> vector<4x8x384xbf16>
    %31 = vector.shape_cast %30 : vector<4x8x384xbf16> to vector<32x384xbf16>
    %c1 = arith.constant 1 : index
    %c0_18 = arith.constant 0 : index
    %c0_19 = arith.constant 0 : index
    %32 = vector.load %arg6[%c1, %c0_18, %c0_19] : memref<3x384x128xbf16, #tpu.memory_space<vmem>>, vector<1x384x128xbf16>
    %33 = vector.shape_cast %32 : vector<1x384x128xbf16> to vector<384x128xbf16>
    %cst_20 = arith.constant dense<0.000000e+00> : vector<32x128xf32>
    %34 = tpu.matmul %31, %33, %cst_20 {dimension_numbers = #tpu.dot_dimension_numbers<[1], [0], [0], [1], [0, 0, 1, 1], [], []>} : vector<32x384xbf16>, vector<384x128xbf16>, vector<32x128xf32> -> vector<32x128xf32>
    %35 = arith.addf %18, %34 : vector<32x128xf32>
    %c1_i32 = arith.constant 1 : i32
    %36 = arith.addi %0, %c1_i32 : i32
    %c0_21 = arith.constant 0 : index
    %37 = arith.index_cast %36 : i32 to index
    %c0_22 = arith.constant 0 : index
    %c0_23 = arith.constant 0 : index
    %38 = vector.load %arg2[%c0_21, %37, %c0_22, %c0_23] : memref<1x9x9x128xbf16, #tpu.memory_space<vmem>>, vector<1x4x9x128xbf16>
    %39 = vector.shape_cast %38 : vector<1x4x9x128xbf16> to vector<4x9x128xbf16>
    %c1_i32_24 = arith.constant 1 : i32
    %40 = arith.addi %0, %c1_i32_24 : i32
    %c0_25 = arith.constant 0 : index
    %41 = arith.index_cast %40 : i32 to index
    %c0_26 = arith.constant 0 : index
    %c0_27 = arith.constant 0 : index
    %42 = vector.load %arg3[%c0_25, %41, %c0_26, %c0_27] : memref<1x9x9x128xbf16, #tpu.memory_space<vmem>>, vector<1x4x9x128xbf16>
    %43 = vector.shape_cast %42 : vector<1x4x9x128xbf16> to vector<4x9x128xbf16>
    %44 = vector.extract_strided_slice %39 {offsets = [0, 0, 0], sizes = [4, 8, 128], strides = [1, 1, 1]} : vector<4x9x128xbf16> to vector<4x8x128xbf16>
    %45 = vector.extract_strided_slice %43 {offsets = [0, 0, 0], sizes = [4, 8, 128], strides = [1, 1, 1]} : vector<4x9x128xbf16> to vector<4x8x128xbf16>
    %46 = vector.extract_strided_slice %39 {offsets = [0, 1, 0], sizes = [4, 8, 128], strides = [1, 1, 1]} : vector<4x9x128xbf16> to vector<4x8x128xbf16>
    %47 = tpu.concatenate %44, %45, %46 in 2 : vector<4x8x128xbf16>, vector<4x8x128xbf16>, vector<4x8x128xbf16> -> vector<4x8x384xbf16>
    %48 = vector.shape_cast %47 : vector<4x8x384xbf16> to vector<32x384xbf16>
    %c2 = arith.constant 2 : index
    %c0_28 = arith.constant 0 : index
    %c0_29 = arith.constant 0 : index
    %49 = vector.load %arg6[%c2, %c0_28, %c0_29] : memref<3x384x128xbf16, #tpu.memory_space<vmem>>, vector<1x384x128xbf16>
    %50 = vector.shape_cast %49 : vector<1x384x128xbf16> to vector<384x128xbf16>
    %cst_30 = arith.constant dense<0.000000e+00> : vector<32x128xf32>
    %51 = tpu.matmul %48, %50, %cst_30 {dimension_numbers = #tpu.dot_dimension_numbers<[1], [0], [0], [1], [0, 0, 1, 1], [], []>} : vector<32x384xbf16>, vector<384x128xbf16>, vector<32x128xf32> -> vector<32x128xf32>
    %52 = arith.addf %35, %51 : vector<32x128xf32>
    %c0_31 = arith.constant 0 : index
    %c0_32 = arith.constant 0 : index
    %53 = vector.load %arg7[%c0_31, %c0_32] : memref<1x128xf32, #tpu.memory_space<vmem>>, vector<1x128xf32>
    %54 = vector.broadcast %53 : vector<1x128xf32> to vector<32x128xf32>
    %55 = arith.mulf %52, %54 : vector<32x128xf32>
    %c0_33 = arith.constant 0 : index
    %c0_34 = arith.constant 0 : index
    %56 = vector.load %arg8[%c0_33, %c0_34] : memref<1x128xf32, #tpu.memory_space<vmem>>, vector<1x128xf32>
    %57 = vector.broadcast %56 : vector<1x128xf32> to vector<32x128xf32>
    %58 = arith.addf %55, %57 : vector<32x128xf32>
    %cst_35 = arith.constant 0.000000e+00 : f32
    %59 = vector.broadcast %cst_35 : f32 to vector<32x128xf32>
    %60 = arith.maximumf %58, %59 : vector<32x128xf32>
    %61 = vector.shape_cast %60 : vector<32x128xf32> to vector<4x8x128xf32>
    %62 = arith.truncf %61 : vector<4x8x128xf32> to vector<4x8x128xbf16>
    %c0_36 = arith.constant 0 : index
    %c0_37 = arith.constant 0 : index
    %c0_38 = arith.constant 0 : index
    %c0_39 = arith.constant 0 : index
    %63 = vector.load %arg9[%c0_36, %c0_37, %c0_38, %c0_39] : memref<1x4x8x128xbf16, #tpu.memory_space<vmem>>, vector<1x4x8x128xbf16>
    %64 = vector.shape_cast %63 : vector<1x4x8x128xbf16> to vector<4x8x128xbf16>
    %65 = vector.shape_cast %62 : vector<4x8x128xbf16> to vector<1x4x8x128xbf16>
    tpu.vector_store %arg9[%c0_36, %c0_37, %c0_38, %c0_39], %65 {strides = array<i32>} : memref<1x4x8x128xbf16, #tpu.memory_space<vmem>>, vector<1x4x8x128xbf16>,
    return
  }
  func.func @transform_0(%arg0: i32, %arg1: i32) -> (i32, i32, i32, i32) {
    %c0_i32 = arith.constant 0 : i32
    %c0_i32_0 = arith.constant 0 : i32
    %c0_i32_1 = arith.constant 0 : i32
    %c0_i32_2 = arith.constant 0 : i32
    return %arg0, %c0_i32, %c0_i32_0, %c0_i32_1 : i32, i32, i32, i32
  }
  func.func @transform_1(%arg0: i32, %arg1: i32) -> (i32, i32, i32, i32) {
    %c0_i32 = arith.constant 0 : i32
    %c0_i32_0 = arith.constant 0 : i32
    %c0_i32_1 = arith.constant 0 : i32
    %c0_i32_2 = arith.constant 0 : i32
    return %arg0, %c0_i32, %c0_i32_0, %c0_i32_1 : i32, i32, i32, i32
  }
  func.func @transform_2(%arg0: i32, %arg1: i32) -> (i32, i32, i32, i32) {
    %c0_i32 = arith.constant 0 : i32
    %c0_i32_0 = arith.constant 0 : i32
    %c0_i32_1 = arith.constant 0 : i32
    %c0_i32_2 = arith.constant 0 : i32
    return %arg0, %c0_i32, %c0_i32_0, %c0_i32_1 : i32, i32, i32, i32
  }
  func.func @transform_3(%arg0: i32, %arg1: i32) -> (i32, i32, i32, i32) {
    %c0_i32 = arith.constant 0 : i32
    %c0_i32_0 = arith.constant 0 : i32
    %c0_i32_1 = arith.constant 0 : i32
    %c0_i32_2 = arith.constant 0 : i32
    return %arg0, %c0_i32, %c0_i32_0, %c0_i32_1 : i32, i32, i32, i32
  }
  func.func @transform_4(%arg0: i32, %arg1: i32) -> (i32, i32, i32) {
    %c0_i32 = arith.constant 0 : i32
    %c0_i32_0 = arith.constant 0 : i32
    %c0_i32_1 = arith.constant 0 : i32
    %c0_i32_2 = arith.constant 0 : i32
    return %c0_i32, %c0_i32_0, %c0_i32_1 : i32, i32, i32
  }
  func.func @transform_5(%arg0: i32, %arg1: i32) -> (i32, i32) {
    %c0_i32 = arith.constant 0 : i32
    %c0_i32_0 = arith.constant 0 : i32
    %c0_i32_1 = arith.constant 0 : i32
    return %c0_i32, %c0_i32_0 : i32, i32
  }
  func.func @transform_6(%arg0: i32, %arg1: i32) -> (i32, i32) {
    %c0_i32 = arith.constant 0 : i32
    %c0_i32_0 = arith.constant 0 : i32
    %c0_i32_1 = arith.constant 0 : i32
    return %c0_i32, %c0_i32_0 : i32, i32
  }
  func.func @transform_7(%arg0: i32, %arg1: i32) -> (i32, i32, i32, i32) {
    %c0_i32 = arith.constant 0 : i32
    %c0_i32_0 = arith.constant 0 : i32
    %c0_i32_1 = arith.constant 0 : i32
    return %arg0, %arg1, %c0_i32, %c0_i32_0 : i32, i32, i32, i32
  }
}

</mosaic_0001>

<llo_original>
// kernel: tpu_custom_call.1
$region0: #{tpu_custom_call.1}
  #allocation0 [shape = 'u32[]', space=smem, size = 0x4, offset = 0x4, fixed_abs, tag = 'smem constant byte address 0x4 - core index']
  #allocation1 [shape = 'u32[144,128]{1,0:T(1,128)}', space=vmem, size = 0x12000, scoped, tag = 'internal scratch']
  %s0 = inlined_call_operand.hbm [shape: bf16[2,9,9,128], index: 0, kind: input, shape index: {}]
  %s1 = inlined_call_operand.hbm [shape: bf16[2,9,9,128], index: 1, kind: input, shape index: {}]
  %s2 = inlined_call_operand.hbm [shape: bf16[2,9,9,128], index: 2, kind: input, shape index: {}]
  %s3 = inlined_call_operand.hbm [shape: bf16[2,9,9,128], index: 3, kind: input, shape index: {}]
  %s4 = inlined_call_operand.hbm [shape: bf16[3,384,128], index: 4, kind: input, shape index: {}]
  %s5 = inlined_call_operand.hbm [shape: f32[1,128], index: 5, kind: input, shape index: {}]
  %s6 = inlined_call_operand.hbm [shape: f32[1,128], index: 6, kind: input, shape index: {}]
  %s7 = inlined_call_operand.hbm [shape: bf16[2,8,8,128], index: 7, kind: output, shape index: {}]
  %s8 = sld [smem:[#allocation0]]
  $region89: #{tpu_custom_call.1} parent=0
    _
  %s10 = ssub.s32 1, %s8
  %s11 = scalar_select 0, %s10, %s8
  $region1: #{tpu_custom_call.1} parent=0
    #allocation2 [shape = 'u8[73728]{0}', space=vmem, size = 0x12000, scoped, tag = 'input window, operand 0']
    #allocation3 [shape = 's32[2]{0}', space=sflag, size = 0x8, scoped, tag = 'scoped memory for tpu_custom_call.1']
    #allocation4 [shape = 's32[2]{0}', space=sflag, size = 0x8, scoped, tag = 'scoped memory for tpu_custom_call.1']
    #allocation5 [shape = 'u8[73728]{0}', space=vmem, size = 0x12000, scoped, tag = 'input window, operand 1']
    #allocation6 [shape = 's32[2]{0}', space=sflag, size = 0x8, scoped, tag = 'scoped memory for tpu_custom_call.1']
    #allocation7 [shape = 'u8[73728]{0}', space=vmem, size = 0x12000, scoped, tag = 'input window, operand 2']
    #allocation8 [shape = 'u8[73728]{0}', space=vmem, size = 0x12000, scoped, tag = 'input window, operand 3']
    #allocation9 [shape = 's32[2]{0}', space=sflag, size = 0x8, scoped, tag = 'scoped memory for tpu_custom_call.1']
    #allocation10 [shape = 'u8[294912]{0}', space=vmem, size = 0x48000, scoped, tag = 'input window, operand 4, single buffered']
    #allocation11 [shape = 'u8[512]{0}', space=vmem, size = 0x400, scoped, tag = 'input window, operand 5, single buffered']
    #allocation12 [shape = 's32[1]{0}', space=sflag, size = 0x4, scoped, tag = 'scoped memory for tpu_custom_call.1']
    #allocation13 [shape = 'u8[512]{0}', space=vmem, size = 0x400, scoped, tag = 'input window, operand 6, single buffered']
    #allocation14 [shape = 'u8[16384]{0}', space=vmem, size = 0x4000, scoped, tag = 'output window, operand 0']
    %12 = vsyncpa [#allocation3], 0
    %s13 = scalar_lea.sflag [#allocation3], 1
    %14 = vsyncpa %s13, 0
    %15 = vsyncpa [#allocation6], 0
    %s16 = scalar_lea.sflag [#allocation6], 1
    %17 = vsyncpa %s16, 0
    %18 = vsyncpa [#allocation9], 0
    %s19 = scalar_lea.sflag [#allocation9], 1
    %20 = vsyncpa %s19, 0
    %21 = vsyncpa [#allocation12], 0
    %22 = vsyncpa [#allocation4], 0
    %s23 = scalar_lea.sflag [#allocation4], 1
    %24 = vsyncpa %s23, 0
    loop: start=0, step=1, limit=6
    $region2: #{tpu_custom_call.1} parent=1 // loop_pre_header
      _
    $region3: #{tpu_custom_call.1} parent=1 // loop_header
      %s26 = sphi 0, %s30
      %p27 = scmp.ge.s32.totalorder %s26, 6
      %s33 = sphi 0, %s45
      %s34 = sphi 0, %s41
      %s35 = sphi 0, %s33
      %s36 = sphi 0, %s34
      %s37 = sphi 0, %s35
      %s38 = sphi 0, %s36
      %s48 = sphi 0, %s50
      %s51 = sphi 0, %s48
      %s52 = sphi 0, %s51
      %s68 = sphi 0, %s52
      %s74 = sphi 0, %s76
      %s77 = sphi 0, %s74
      %s78 = sphi 0, %s77
      %s94 = sphi 0, %s78
      %s100 = sphi 0, %s102
      %s103 = sphi 0, %s100
      %s104 = sphi 0, %s103
      %s120 = sphi 0, %s104
      %s126 = sphi 0, %s128
      %s129 = sphi 0, %s126
      %s130 = sphi 0, %s129
      %s146 = sphi 0, %s130
      %s150 = sphi 0, %s150
      %s152 = sphi 0, %s150
      %s153 = sphi 0, %s152
      %s167 = sphi 0, %s153
      %s171 = sphi 0, %s171
      %s173 = sphi 0, %s171
      %s174 = sphi 0, %s173
      %s188 = sphi 0, %s174
      %s192 = sphi 0, %s192
      %s194 = sphi 0, %s192
      %s195 = sphi 0, %s194
      %s209 = sphi 0, %s195
      %s217 = sphi 0, %s219
      %s220 = sphi 0, %s217
      %s221 = sphi 0, %s220
      %s237 = sphi 0, %s221
    $region4: #{tpu_custom_call.1} parent=1 // loop_header_branch
      %29 = sbr.rel (%p27) target = $region8
    $region5: #{tpu_custom_call.1} parent=1 // loop_body
      %s31 = ssub.s32 %s26, 1
      %s32 = ssub.s32 %s26, 2
      %s39 = sadd.s32 1, %s34
      %p40 = scmp.ge.s32.totalorder %s39, 2
      %s41 = scalar_select %p40, 0, %s39
      %s42 = sadd.s32 1, %s33
      %s43 = scalar_select %p40, %s42, %s33
      %p44 = scmp.ge.s32.totalorder %s43, 2
      %s45 = scalar_select %p44, 0, %s43
      %s46 = ssub.s32 %s33, %s45
      %p47 = scmp.eq.s32.totalorder %s46, 0
      %s49 = sadd.s32 %s48, 1
      %s50 = scalar_select %p47, %s48, %s49
      %p53 = pneg %p47
      %p54 = scmp.eq.s32.totalorder %s26, 3
      %p55 = por %p53, %p54
      %p56 = scmp.ne.s32.totalorder %s48, %s51
      %p57 = scmp.eq.s32.totalorder %s26, 0
      %p58 = por %p56, %p57
      %p59 = scmp.ne.s32.totalorder %s48, %s51
      %p60 = scmp.eq.s32.totalorder %s31, 3
      %p61 = por %p59, %p60
      %p62 = scmp.ne.s32.totalorder %s51, %s52
      %p63 = scmp.eq.s32.totalorder %s31, 0
      %p64 = por %p62, %p63
      %p65 = scmp.ne.s32.totalorder %s51, %s52
      %p66 = scmp.eq.s32.totalorder %s32, 3
      %p67 = por %p65, %p66
      %p69 = scmp.ne.s32.totalorder %s52, %s68
      %p70 = scmp.eq.s32.totalorder %s32, 0
      %p71 = por %p69, %p70
      %s72 = ssub.s32 %s33, %s45
      %p73 = scmp.eq.s32.totalorder %s72, 0
      %s75 = sadd.s32 %s74, 1
      %s76 = scalar_select %p73, %s74, %s75
      %p79 = pneg %p73
      %p80 = scmp.eq.s32.totalorder %s26, 3
      %p81 = por %p79, %p80
      %p82 = scmp.ne.s32.totalorder %s74, %s77
      %p83 = scmp.eq.s32.totalorder %s26, 0
      %p84 = por %p82, %p83
      %p85 = scmp.ne.s32.totalorder %s74, %s77
      %p86 = scmp.eq.s32.totalorder %s31, 3
      %p87 = por %p85, %p86
      %p88 = scmp.ne.s32.totalorder %s77, %s78
      %p89 = scmp.eq.s32.totalorder %s31, 0
      %p90 = por %p88, %p89
      %p91 = scmp.ne.s32.totalorder %s77, %s78
      %p92 = scmp.eq.s32.totalorder %s32, 3
      %p93 = por %p91, %p92
      %p95 = scmp.ne.s32.totalorder %s78, %s94
      %p96 = scmp.eq.s32.totalorder %s32, 0
      %p97 = por %p95, %p96
      %s98 = ssub.s32 %s33, %s45
      %p99 = scmp.eq.s32.totalorder %s98, 0
      %s101 = sadd.s32 %s100, 1
      %s102 = scalar_select %p99, %s100, %s101
      %p105 = pneg %p99
      %p106 = scmp.eq.s32.totalorder %s26, 3
      %p107 = por %p105, %p106
      %p108 = scmp.ne.s32.totalorder %s100, %s103
      %p109 = scmp.eq.s32.totalorder %s26, 0
      %p110 = por %p108, %p109
      %p111 = scmp.ne.s32.totalorder %s100, %s103
      %p112 = scmp.eq.s32.totalorder %s31, 3
      %p113 = por %p111, %p112
      %p114 = scmp.ne.s32.totalorder %s103, %s104
      %p115 = scmp.eq.s32.totalorder %s31, 0
      %p116 = por %p114, %p115
      %p117 = scmp.ne.s32.totalorder %s103, %s104
      %p118 = scmp.eq.s32.totalorder %s32, 3
      %p119 = por %p117, %p118
      %p121 = scmp.ne.s32.totalorder %s104, %s120
      %p122 = scmp.eq.s32.totalorder %s32, 0
      %p123 = por %p121, %p122
      %s124 = ssub.s32 %s33, %s45
      %p125 = scmp.eq.s32.totalorder %s124, 0
      %s127 = sadd.s32 %s126, 1
      %s128 = scalar_select %p125, %s126, %s127
      %p131 = pneg %p125
      %p132 = scmp.eq.s32.totalorder %s26, 3
      %p133 = por %p131, %p132
      %p134 = scmp.ne.s32.totalorder %s126, %s129
      %p135 = scmp.eq.s32.totalorder %s26, 0
      %p136 = por %p134, %p135
      %p137 = scmp.ne.s32.totalorder %s126, %s129
      %p138 = scmp.eq.s32.totalorder %s31, 3
      %p139 = por %p137, %p138
      %p140 = scmp.ne.s32.totalorder %s129, %s130
      %p141 = scmp.eq.s32.totalorder %s31, 0
      %p142 = por %p140, %p141
      %p143 = scmp.ne.s32.totalorder %s129, %s130
      %p144 = scmp.eq.s32.totalorder %s32, 3
      %p145 = por %p143, %p144
      %p147 = scmp.ne.s32.totalorder %s130, %s146
      %p148 = scmp.eq.s32.totalorder %s32, 0
      %p149 = por %p147, %p148
      %s151 = sadd.s32 %s150, 1
      %p154 = scmp.eq.s32.totalorder %s26, 3
      %p155 = scmp.ne.s32.totalorder %s150, %s152
      %p156 = scmp.eq.s32.totalorder %s26, 0
      %p157 = por %p155, %p156
      %p158 = scmp.ne.s32.totalorder %s150, %s152
      %p159 = scmp.eq.s32.totalorder %s31, 3
      %p160 = por %p158, %p159
      %p161 = scmp.ne.s32.totalorder %s152, %s153
      %p162 = scmp.eq.s32.totalorder %s31, 0
      %p163 = por %p161, %p162
      %p164 = scmp.ne.s32.totalorder %s152, %s153
      %p165 = scmp.eq.s32.totalorder %s32, 3
      %p166 = por %p164, %p165
      %p168 = scmp.ne.s32.totalorder %s153, %s167
      %p169 = scmp.eq.s32.totalorder %s32, 0
      %p170 = por %p168, %p169
      %s172 = sadd.s32 %s171, 1
      %p175 = scmp.eq.s32.totalorder %s26, 3
      %p176 = scmp.ne.s32.totalorder %s171, %s173
      %p177 = scmp.eq.s32.totalorder %s26, 0
      %p178 = por %p176, %p177
      %p179 = scmp.ne.s32.totalorder %s171, %s173
      %p180 = scmp.eq.s32.totalorder %s31, 3
      %p181 = por %p179, %p180
      %p182 = scmp.ne.s32.totalorder %s173, %s174
      %p183 = scmp.eq.s32.totalorder %s31, 0
      %p184 = por %p182, %p183
      %p185 = scmp.ne.s32.totalorder %s173, %s174
      %p186 = scmp.eq.s32.totalorder %s32, 3
      %p187 = por %p185, %p186
      %p189 = scmp.ne.s32.totalorder %s174, %s188
      %p190 = scmp.eq.s32.totalorder %s32, 0
      %p191 = por %p189, %p190
      %s193 = sadd.s32 %s192, 1
      %p196 = scmp.eq.s32.totalorder %s26, 3
      %p197 = scmp.ne.s32.totalorder %s192, %s194
      %p198 = scmp.eq.s32.totalorder %s26, 0
      %p199 = por %p197, %p198
      %p200 = scmp.ne.s32.totalorder %s192, %s194
      %p201 = scmp.eq.s32.totalorder %s31, 3
      %p202 = por %p200, %p201
      %p203 = scmp.ne.s32.totalorder %s194, %s195
      %p204 = scmp.eq.s32.totalorder %s31, 0
      %p205 = por %p203, %p204
      %p206 = scmp.ne.s32.totalorder %s194, %s195
      %p207 = scmp.eq.s32.totalorder %s32, 3
      %p208 = por %p206, %p207
      %p210 = scmp.ne.s32.totalorder %s195, %s209
      %p211 = scmp.eq.s32.totalorder %s32, 0
      %p212 = por %p210, %p211
      %s213 = ssub.s32 %s33, %s45
      %s214 = ssub.s32 %s34, %s41
      %s215 = sor.u32 %s213, %s214
      %p216 = scmp.eq.s32.totalorder %s215, 0
      %s218 = sadd.s32 %s217, 1
      %s219 = scalar_select %p216, %s217, %s218
      %p222 = pneg %p216
      %p223 = scmp.eq.s32.totalorder %s26, 3
      %p224 = por %p222, %p223
      %p225 = scmp.ne.s32.totalorder %s217, %s220
      %p226 = scmp.eq.s32.totalorder %s26, 0
      %p227 = por %p225, %p226
      %p228 = scmp.ne.s32.totalorder %s217, %s220
      %p229 = scmp.eq.s32.totalorder %s31, 3
      %p230 = por %p228, %p229
      %p231 = scmp.ne.s32.totalorder %s220, %s221
      %p232 = scmp.eq.s32.totalorder %s31, 0
      %p233 = por %p231, %p232
      %p234 = scmp.ne.s32.totalorder %s220, %s221
      %p235 = scmp.eq.s32.totalorder %s32, 3
      %p236 = por %p234, %p235
      %p238 = scmp.ne.s32.totalorder %s221, %s237
      %p239 = scmp.eq.s32.totalorder %s32, 0
      %p240 = por %p238, %p239
      %p241 = scmp.le.s32.totalorder 1, %s26
      %p242 = scmp.lt.s32.totalorder %s26, 5
      %p243 = pnand %p241, %p242
      %p244 = pneg %p243
      // Predicated region
      $region9: #{tpu_custom_call.1} parent=5 // pred_check
        _
      $region10: #{tpu_custom_call.1} parent=5 // pred_check_branch
        %246 = sbr.rel (%p243) target = $region12
      $region11: #{tpu_custom_call.1} parent=5 // pred_region
        %s247 = ssub.s32 %s26, 1
        // Predicated region
        $region13: #{tpu_custom_call.1} parent=11 // pred_check
          %p248 = pneg %p163
        $region14: #{tpu_custom_call.1} parent=11 // pred_check_branch
          %250 = sbr.rel (%p248) target = $region16
        $region15: #{tpu_custom_call.1} parent=11 // pred_region
          %s252 = ssub.s32 9216, 9216
          %253 = vsyncadd [#allocation9], %s252
          %s254 = sshll.u32 [#allocation10], 4
          %s255 = int_to_ptr.vmem [resolvable:$true] %s254
          %260 = dma.hbm_to_vmem [thread:$0]  %s4, 9216, %s255, [#allocation9], 64, 64, 4
        $region16: #{tpu_custom_call.1} parent=11 // pred_fallthru
          _
        // Predicated region
        $region17: #{tpu_custom_call.1} parent=11 // pred_check
          %p261 = pneg %p184
        $region18: #{tpu_custom_call.1} parent=11 // pred_check_branch
          %263 = sbr.rel (%p261) target = $region20
        $region19: #{tpu_custom_call.1} parent=11 // pred_region
          %s265 = ssub.s32 16, 16
          %266 = vsyncadd [#allocation12], %s265
          %s268 = sshll.u32 [#allocation11], 4
          %s269 = int_to_ptr.vmem [resolvable:$true] %s268
          %271 = dma.hbm_to_vmem [thread:$0]  %s5, 16, %s269, [#allocation12]
        $region20: #{tpu_custom_call.1} parent=11 // pred_fallthru
          _
        // Predicated region
        $region21: #{tpu_custom_call.1} parent=11 // pred_check
          %p272 = pneg %p205
        $region22: #{tpu_custom_call.1} parent=11 // pred_check_branch
          %274 = sbr.rel (%p272) target = $region24
        $region23: #{tpu_custom_call.1} parent=11 // pred_region
          %s276 = ssub.s32 16, 16
          %277 = vsyncadd [#allocation12], %s276
          %s279 = sshll.u32 [#allocation13], 4
          %s280 = int_to_ptr.vmem [resolvable:$true] %s279
          %282 = dma.hbm_to_vmem [thread:$0]  %s6, 16, %s280, [#allocation12]
        $region24: #{tpu_custom_call.1} parent=11 // pred_fallthru
          _
      $region12: #{tpu_custom_call.1} parent=5 // pred_fallthru
        _
      %p283 = scmp.lt.s32.totalorder %s26, 4
      // Predicated region
      $region25: #{tpu_custom_call.1} parent=5 // pred_check
        %p284 = pneg %p283
      $region26: #{tpu_custom_call.1} parent=5 // pred_check_branch
        %286 = sbr.rel (%p284) target = $region28
      $region27: #{tpu_custom_call.1} parent=5 // pred_region
        // Predicated region
        $region29: #{tpu_custom_call.1} parent=27 // pred_check
          %p287 = pneg %p58
        $region30: #{tpu_custom_call.1} parent=27 // pred_check_branch
          %289 = sbr.rel (%p287) target = $region32
        $region31: #{tpu_custom_call.1} parent=27 // pred_region
          %s290 = sand.u32 %s48, 1
          %s291 = scalar_lea.sflag [#allocation3], %s290
          %s292 = sand.u32 %s48, 1
          %s293 = smul.addr %s292, 72
          %s294 = scalar_lea.vmem [#allocation2], %s293
          %s296 = ssub.s32 1152, 1152
          %297 = vsyncadd %s291, %s296
          %s298 = smul.addr %s33, 18
          %s299 = smul.addr %s298, 64
          %s300 = scalar_lea.hbm %s0, %s299
          %s301 = sshll.u32 %s294, 4
          %s302 = int_to_ptr.vmem [resolvable:$true] %s301
          %307 = dma.hbm_to_vmem [thread:$0]  %s300, 1152, %s302, %s291, 64, 64, 4
        $region32: #{tpu_custom_call.1} parent=27 // pred_fallthru
          _
        // Predicated region
        $region33: #{tpu_custom_call.1} parent=27 // pred_check
          %p308 = pneg %p84
        $region34: #{tpu_custom_call.1} parent=27 // pred_check_branch
          %310 = sbr.rel (%p308) target = $region36
        $region35: #{tpu_custom_call.1} parent=27 // pred_region
          %s311 = sand.u32 %s26, 1
          %s312 = scalar_lea.sflag [#allocation6], %s311
          %s313 = sand.u32 %s74, 1
          %s314 = smul.addr %s313, 72
          %s315 = scalar_lea.vmem [#allocation5], %s314
          %s317 = ssub.s32 1152, 1152
          %318 = vsyncadd %s312, %s317
          %s319 = smul.addr %s33, 18
          %s320 = smul.addr %s319, 64
          %s321 = scalar_lea.hbm %s1, %s320
          %s322 = sshll.u32 %s315, 4
          %s323 = int_to_ptr.vmem [resolvable:$true] %s322
          %328 = dma.hbm_to_vmem [thread:$0]  %s321, 1152, %s323, %s312, 64, 64, 4
        $region36: #{tpu_custom_call.1} parent=27 // pred_fallthru
          _
        // Predicated region
        $region37: #{tpu_custom_call.1} parent=27 // pred_check
          %p329 = pneg %p110
        $region38: #{tpu_custom_call.1} parent=27 // pred_check_branch
          %331 = sbr.rel (%p329) target = $region40
        $region39: #{tpu_custom_call.1} parent=27 // pred_region
          %s332 = sand.u32 %s26, 1
          %s333 = scalar_lea.sflag [#allocation6], %s332
          %s334 = sand.u32 %s100, 1
          %s335 = smul.addr %s334, 72
          %s336 = scalar_lea.vmem [#allocation7], %s335
          %s338 = ssub.s32 1152, 1152
          %339 = vsyncadd %s333, %s338
          %s340 = smul.addr %s33, 18
          %s341 = smul.addr %s340, 64
          %s342 = scalar_lea.hbm %s2, %s341
          %s343 = sshll.u32 %s336, 4
          %s344 = int_to_ptr.vmem [resolvable:$true] %s343
          %349 = dma.hbm_to_vmem [thread:$0]  %s342, 1152, %s344, %s333, 64, 64, 4
        $region40: #{tpu_custom_call.1} parent=27 // pred_fallthru
          _
        // Predicated region
        $region41: #{tpu_custom_call.1} parent=27 // pred_check
          %p350 = pneg %p136
        $region42: #{tpu_custom_call.1} parent=27 // pred_check_branch
          %352 = sbr.rel (%p350) target = $region44
        $region43: #{tpu_custom_call.1} parent=27 // pred_region
          %s353 = sand.u32 %s26, 1
          %s354 = scalar_lea.sflag [#allocation9], %s353
          %s355 = sand.u32 %s126, 1
          %s356 = smul.addr %s355, 72
          %s357 = scalar_lea.vmem [#allocation8], %s356
          %s359 = ssub.s32 1152, 1152
          %360 = vsyncadd %s354, %s359
          %s361 = smul.addr %s33, 18
          %s362 = smul.addr %s361, 64
          %s363 = scalar_lea.hbm %s3, %s362
          %s364 = sshll.u32 %s357, 4
          %s365 = int_to_ptr.vmem [resolvable:$true] %s364
          %370 = dma.hbm_to_vmem [thread:$0]  %s363, 1152, %s365, %s354, 64, 64, 4
        $region44: #{tpu_custom_call.1} parent=27 // pred_fallthru
          _
      $region28: #{tpu_custom_call.1} parent=5 // pred_fallthru
        _
      %p371 = scmp.le.s32.totalorder 1, %s26
      %p372 = scmp.lt.s32.totalorder %s26, 5
      %p373 = pnand %p371, %p372
      %p374 = pneg %p373
      // Predicated region
      $region45: #{tpu_custom_call.1} parent=5 // pred_check
        _
      $region46: #{tpu_custom_call.1} parent=5 // pred_check_branch
        %376 = sbr.rel (%p373) target = $region48
      $region47: #{tpu_custom_call.1} parent=5 // pred_region
        %s377 = ssub.s32 %s26, 1
        %s378 = sand.u32 %s51, 1
        %s379 = scalar_lea.sflag [#allocation3], %s378
        %s380 = sand.u32 %s51, 1
        %s381 = smul.addr %s380, 72
        %s382 = scalar_lea.vmem [#allocation2], %s381
        // Predicated region
        $region49: #{tpu_custom_call.1} parent=47 // pred_check
          %p383 = pneg %p64
        $region50: #{tpu_custom_call.1} parent=47 // pred_check_branch
          %385 = sbr.rel (%p383) target = $region52
        $region51: #{tpu_custom_call.1} parent=47 // pred_region
          %386 = dma.done %s379, 1152
        $region52: #{tpu_custom_call.1} parent=47 // pred_fallthru
          _
        %s387 = sand.u32 %s31, 1
        %s388 = scalar_lea.sflag [#allocation6], %s387
        %s389 = sand.u32 %s77, 1
        %s390 = smul.addr %s389, 72
        %s391 = scalar_lea.vmem [#allocation5], %s390
        // Predicated region
        $region53: #{tpu_custom_call.1} parent=47 // pred_check
          %p392 = pneg %p90
        $region54: #{tpu_custom_call.1} parent=47 // pred_check_branch
          %394 = sbr.rel (%p392) target = $region56
        $region55: #{tpu_custom_call.1} parent=47 // pred_region
          %395 = dma.done %s388, 1152
        $region56: #{tpu_custom_call.1} parent=47 // pred_fallthru
          _
        %s396 = sand.u32 %s31, 1
        %s397 = scalar_lea.sflag [#allocation6], %s396
        %s398 = sand.u32 %s103, 1
        %s399 = smul.addr %s398, 72
        %s400 = scalar_lea.vmem [#allocation7], %s399
        // Predicated region
        $region57: #{tpu_custom_call.1} parent=47 // pred_check
          %p401 = pneg %p116
        $region58: #{tpu_custom_call.1} parent=47 // pred_check_branch
          %403 = sbr.rel (%p401) target = $region60
        $region59: #{tpu_custom_call.1} parent=47 // pred_region
          %404 = dma.done %s397, 1152
        $region60: #{tpu_custom_call.1} parent=47 // pred_fallthru
          _
        %s405 = sand.u32 %s31, 1
        %s406 = scalar_lea.sflag [#allocation9], %s405
        %s407 = sand.u32 %s129, 1
        %s408 = smul.addr %s407, 72
        %s409 = scalar_lea.vmem [#allocation8], %s408
        // Predicated region
        $region61: #{tpu_custom_call.1} parent=47 // pred_check
          %p410 = pneg %p142
        $region62: #{tpu_custom_call.1} parent=47 // pred_check_branch
          %412 = sbr.rel (%p410) target = $region64
        $region63: #{tpu_custom_call.1} parent=47 // pred_region
          %413 = dma.done %s406, 1152
        $region64: #{tpu_custom_call.1} parent=47 // pred_fallthru
          _
        // Predicated region
        $region65: #{tpu_custom_call.1} parent=47 // pred_check
          %p414 = pneg %p163
        $region66: #{tpu_custom_call.1} parent=47 // pred_check_branch
          %416 = sbr.rel (%p414) target = $region68
        $region67: #{tpu_custom_call.1} parent=47 // pred_region
          %417 = dma.done [#allocation9], 9216
        $region68: #{tpu_custom_call.1} parent=47 // pred_fallthru
          _
        // Predicated region
        $region69: #{tpu_custom_call.1} parent=47 // pred_check
          %p418 = pneg %p184
        $region70: #{tpu_custom_call.1} parent=47 // pred_check_branch
          %420 = sbr.rel (%p418) target = $region72
        $region71: #{tpu_custom_call.1} parent=47 // pred_region
          %421 = dma.done [#allocation12], 16
        $region72: #{tpu_custom_call.1} parent=47 // pred_fallthru
          _
        // Predicated region
        $region73: #{tpu_custom_call.1} parent=47 // pred_check
          %p422 = pneg %p205
        $region74: #{tpu_custom_call.1} parent=47 // pred_check_branch
          %424 = sbr.rel (%p422) target = $region76
        $region75: #{tpu_custom_call.1} parent=47 // pred_region
          %425 = dma.done [#allocation12], 16
        $region76: #{tpu_custom_call.1} parent=47 // pred_fallthru
          _
        %s426 = sand.u32 %s51, 1
        %s427 = scalar_lea.sflag [#allocation3], %s426
        %s428 = sand.u32 %s51, 1
        %s429 = smul.addr %s428, 72
        %s430 = scalar_lea.vmem [#allocation2], %s429
        %p431 = pneg %p64
        %p432 = pneg %p61
        %s433 = sand.u32 %s31, 1
        %s434 = scalar_lea.sflag [#allocation6], %s433
        %s435 = sand.u32 %s77, 1
        %s436 = smul.addr %s435, 72
        %s437 = scalar_lea.vmem [#allocation5], %s436
        %p438 = pneg %p90
        %p439 = pneg %p87
        %s440 = sand.u32 %s31, 1
        %s441 = scalar_lea.sflag [#allocation6], %s440
        %s442 = sand.u32 %s103, 1
        %s443 = smul.addr %s442, 72
        %s444 = scalar_lea.vmem [#allocation7], %s443
        %p445 = pneg %p116
        %p446 = pneg %p113
        %s447 = sand.u32 %s31, 1
        %s448 = scalar_lea.sflag [#allocation9], %s447
        %s449 = sand.u32 %s129, 1
        %s450 = smul.addr %s449, 72
        %s451 = scalar_lea.vmem [#allocation8], %s450
        %p452 = pneg %p142
        %p453 = pneg %p139
        %p454 = pneg %p163
        %p455 = pneg %p160
        %p456 = pneg %p184
        %p457 = pneg %p181
        %p458 = pneg %p205
        %p459 = pneg %p202
        %p460 = pneg %p233
        %p461 = pneg %p230
        %s462 = sand.u32 %s220, 1
        %s463 = scalar_lea.sflag [#allocation4], %s462
        %s464 = sand.u32 %s220, 1
        %s465 = smul.addr %s464, 16
        %s466 = scalar_lea.vmem [#allocation14], %s465
        %s467 = smul.u32 4, %s36
        %s469 = smul.u32 %s36, 4
        %s470 = smul.u32 %s469, 2
        %s471 = smul.addr %s470, 4
        %s472 = scalar_lea.vmem %s382, %s471 [#allocation2]
        %v473 = vld [vmem:[%s472] sm:$0xf]
        %v474 = vld [vmem:[%s472 + $0x4] sm:$0x1]
        %v475 = vld [vmem:[%s472 + $0x8] sm:$0xf]
        %v476 = vld [vmem:[%s472 + $0xc] sm:$0x1]
        %v477 = vld [vmem:[%s472 + $0x10] sm:$0xf]
        %v478 = vld [vmem:[%s472 + $0x14] sm:$0x1]
        %v479 = vld [vmem:[%s472 + $0x18] sm:$0xf]
        %v480 = vld [vmem:[%s472 + $0x1c] sm:$0x1]
        %s481 = smul.addr %s470, 4
        %s482 = scalar_lea.vmem %s391, %s481 [#allocation5]
        %v483 = vld [vmem:[%s482] sm:$0xf]
        %v484 = vld [vmem:[%s482 + $0x8] sm:$0xf]
        %v485 = vld [vmem:[%s482 + $0x10] sm:$0xf]
        %v486 = vld [vmem:[%s482 + $0x18] sm:$0xf]
        %v495 = vunpack.c.l.b16 %v473
        %v496 = vunpack.c.l.b16 %v474
        %v497 = vunpack.c.l.b16 %v475
        %v498 = vunpack.c.l.b16 %v476
        %v499 = vunpack.c.l.b16 %v477
        %v500 = vunpack.c.l.b16 %v478
        %v501 = vunpack.c.l.b16 %v479
        %v502 = vunpack.c.l.b16 %v480
        %v503 = vpack.c.b16 %v496, %v495
        %v504 = vpack.c.b16 %v498, %v497
        %v505 = vpack.c.b16 %v500, %v499
        %v506 = vpack.c.b16 %v502, %v501
        %v508 = vshrl.u32 %v503, 16
        %v510 = vshll.u32 %v503, 16
        %v512 = vrot.slane %v510, 1
        %v513 = vor.u32 %v508, %v512
        %v515 = vshrl.u32 %v504, 16
        %v517 = vshll.u32 %v504, 16
        %v519 = vrot.slane %v517, 1
        %v520 = vor.u32 %v515, %v519
        %v522 = vshrl.u32 %v505, 16
        %v524 = vshll.u32 %v505, 16
        %v526 = vrot.slane %v524, 1
        %v527 = vor.u32 %v522, %v526
        %v529 = vshrl.u32 %v506, 16
        %v531 = vshll.u32 %v506, 16
        %v533 = vrot.slane %v531, 1
        %v534 = vor.u32 %v529, %v533
        %v539 = vunpack.c.l.b16 %v483
        %v540 = vunpack.c.l.b16 %v513
        %v541 = vunpack.c.l.b16 %v484
        %v542 = vunpack.c.l.b16 %v520
        %v543 = vunpack.c.l.b16 %v485
        %v544 = vunpack.c.l.b16 %v527
        %v545 = vunpack.c.l.b16 %v486
        %v546 = vunpack.c.l.b16 %v534
        %v547 = vld [vmem:[#allocation10] sm:$0xf]
        %v548 = vld [vmem:[#allocation10 + $0x4] sm:$0xf]
        %v549 = vld [vmem:[#allocation10 + $0x8] sm:$0xf]
        %v550 = vld [vmem:[#allocation10 + $0xc] sm:$0xf]
        %v551 = vld [vmem:[#allocation10 + $0x10] sm:$0xf]
        %v552 = vld [vmem:[#allocation10 + $0x14] sm:$0xf]
        %v553 = vld [vmem:[#allocation10 + $0x18] sm:$0xf]
        %v554 = vld [vmem:[#allocation10 + $0x1c] sm:$0xf]
        %v555 = vld [vmem:[#allocation10 + $0x20] sm:$0xf]
        %v556 = vld [vmem:[#allocation10 + $0x24] sm:$0xf]
        %v557 = vld [vmem:[#allocation10 + $0x28] sm:$0xf]
        %v558 = vld [vmem:[#allocation10 + $0x2c] sm:$0xf]
        %v559 = vld [vmem:[#allocation10 + $0x30] sm:$0xf]
        %v560 = vld [vmem:[#allocation10 + $0x34] sm:$0xf]
        %v561 = vld [vmem:[#allocation10 + $0x38] sm:$0xf]
        %v562 = vld [vmem:[#allocation10 + $0x3c] sm:$0xf]
        %v563 = vld [vmem:[#allocation10 + $0x40] sm:$0xf]
        %v564 = vld [vmem:[#allocation10 + $0x44] sm:$0xf]
        %v565 = vld [vmem:[#allocation10 + $0x48] sm:$0xf]
        %v566 = vld [vmem:[#allocation10 + $0x4c] sm:$0xf]
        %v567 = vld [vmem:[#allocation10 + $0x50] sm:$0xf]
        %v568 = vld [vmem:[#allocation10 + $0x54] sm:$0xf]
        %v569 = vld [vmem:[#allocation10 + $0x58] sm:$0xf]
        %v570 = vld [vmem:[#allocation10 + $0x5c] sm:$0xf]
        %v571 = vld [vmem:[#allocation10 + $0x60] sm:$0xf]
        %v572 = vld [vmem:[#allocation10 + $0x64] sm:$0xf]
        %v573 = vld [vmem:[#allocation10 + $0x68] sm:$0xf]
        %v574 = vld [vmem:[#allocation10 + $0x6c] sm:$0xf]
        %v575 = vld [vmem:[#allocation10 + $0x70] sm:$0xf]
        %v576 = vld [vmem:[#allocation10 + $0x74] sm:$0xf]
        %v577 = vld [vmem:[#allocation10 + $0x78] sm:$0xf]
        %v578 = vld [vmem:[#allocation10 + $0x7c] sm:$0xf]
        %v579 = vld [vmem:[#allocation10 + $0x80] sm:$0xf]
        %v580 = vld [vmem:[#allocation10 + $0x84] sm:$0xf]
        %v581 = vld [vmem:[#allocation10 + $0x88] sm:$0xf]
        %v582 = vld [vmem:[#allocation10 + $0x8c] sm:$0xf]
        %v583 = vld [vmem:[#allocation10 + $0x90] sm:$0xf]
        %v584 = vld [vmem:[#allocation10 + $0x94] sm:$0xf]
        %v585 = vld [vmem:[#allocation10 + $0x98] sm:$0xf]
        %v586 = vld [vmem:[#allocation10 + $0x9c] sm:$0xf]
        %v587 = vld [vmem:[#allocation10 + $0xa0] sm:$0xf]
        %v588 = vld [vmem:[#allocation10 + $0xa4] sm:$0xf]
        %v589 = vld [vmem:[#allocation10 + $0xa8] sm:$0xf]
        %v590 = vld [vmem:[#allocation10 + $0xac] sm:$0xf]
        %v591 = vld [vmem:[#allocation10 + $0xb0] sm:$0xf]
        %v592 = vld [vmem:[#allocation10 + $0xb4] sm:$0xf]
        %v593 = vld [vmem:[#allocation10 + $0xb8] sm:$0xf]
        %v594 = vld [vmem:[#allocation10 + $0xbc] sm:$0xf]
        %s595 = smul.addr %s470, 4
        %s596 = scalar_lea.vmem %s400, %s595 [#allocation7]
        %v597 = vld [vmem:[%s596] sm:$0xf]
        %v598 = vld [vmem:[%s596 + $0x4] sm:$0x1]
        %v599 = vld [vmem:[%s596 + $0x8] sm:$0xf]
        %v600 = vld [vmem:[%s596 + $0xc] sm:$0x1]
        %v601 = vld [vmem:[%s596 + $0x10] sm:$0xf]
        %v602 = vld [vmem:[%s596 + $0x14] sm:$0x1]
        %v603 = vld [vmem:[%s596 + $0x18] sm:$0xf]
        %v604 = vld [vmem:[%s596 + $0x1c] sm:$0x1]
        %s605 = smul.addr %s470, 4
        %s606 = scalar_lea.vmem %s409, %s605 [#allocation8]
        %v607 = vld [vmem:[%s606] sm:$0xf]
        %v608 = vld [vmem:[%s606 + $0x8] sm:$0xf]
        %v609 = vld [vmem:[%s606 + $0x10] sm:$0xf]
        %v610 = vld [vmem:[%s606 + $0x18] sm:$0xf]
        %v619 = vunpack.c.l.b16 %v597
        %v620 = vunpack.c.l.b16 %v598
        %v621 = vunpack.c.l.b16 %v599
        %v622 = vunpack.c.l.b16 %v600
        %v623 = vunpack.c.l.b16 %v601
        %v624 = vunpack.c.l.b16 %v602
        %v625 = vunpack.c.l.b16 %v603
        %v626 = vunpack.c.l.b16 %v604
        %v627 = vpack.c.b16 %v620, %v619
        %v628 = vpack.c.b16 %v622, %v621
        %v629 = vpack.c.b16 %v624, %v623
        %v630 = vpack.c.b16 %v626, %v625
        %v632 = vshrl.u32 %v627, 16
        %v634 = vshll.u32 %v627, 16
        %v636 = vrot.slane %v634, 1
        %v637 = vor.u32 %v632, %v636
        %v639 = vshrl.u32 %v628, 16
        %v641 = vshll.u32 %v628, 16
        %v643 = vrot.slane %v641, 1
        %v644 = vor.u32 %v639, %v643
        %v646 = vshrl.u32 %v629, 16
        %v648 = vshll.u32 %v629, 16
        %v650 = vrot.slane %v648, 1
        %v651 = vor.u32 %v646, %v650
        %v653 = vshrl.u32 %v630, 16
        %v655 = vshll.u32 %v630, 16
        %v657 = vrot.slane %v655, 1
        %v658 = vor.u32 %v653, %v657
        %v663 = vunpack.c.l.b16 %v607
        %v664 = vunpack.c.l.b16 %v637
        %v665 = vunpack.c.l.b16 %v608
        %v666 = vunpack.c.l.b16 %v644
        %v667 = vunpack.c.l.b16 %v609
        %v668 = vunpack.c.l.b16 %v651
        %v669 = vunpack.c.l.b16 %v610
        %v670 = vunpack.c.l.b16 %v658
        %s671 = scalar_lea.vmem [#allocation10], 192
        %v672 = vld [vmem:[%s671] sm:$0xf]
        %v673 = vld [vmem:[%s671 + $0x4] sm:$0xf]
        %v674 = vld [vmem:[%s671 + $0x8] sm:$0xf]
        %v675 = vld [vmem:[%s671 + $0xc] sm:$0xf]
        %v676 = vld [vmem:[%s671 + $0x10] sm:$0xf]
        %v677 = vld [vmem:[%s671 + $0x14] sm:$0xf]
        %v678 = vld [vmem:[%s671 + $0x18] sm:$0xf]
        %v679 = vld [vmem:[%s671 + $0x1c] sm:$0xf]
        %v680 = vld [vmem:[%s671 + $0x20] sm:$0xf]
        %v681 = vld [vmem:[%s671 + $0x24] sm:$0xf]
        %v682 = vld [vmem:[%s671 + $0x28] sm:$0xf]
        %v683 = vld [vmem:[%s671 + $0x2c] sm:$0xf]
        %v684 = vld [vmem:[%s671 + $0x30] sm:$0xf]
        %v685 = vld [vmem:[%s671 + $0x34] sm:$0xf]
        %v686 = vld [vmem:[%s671 + $0x38] sm:$0xf]
        %v687 = vld [vmem:[%s671 + $0x3c] sm:$0xf]
        %v688 = vld [vmem:[%s671 + $0x40] sm:$0xf]
        %v689 = vld [vmem:[%s671 + $0x44] sm:$0xf]
        %v690 = vld [vmem:[%s671 + $0x48] sm:$0xf]
        %v691 = vld [vmem:[%s671 + $0x4c] sm:$0xf]
        %v692 = vld [vmem:[%s671 + $0x50] sm:$0xf]
        %v693 = vld [vmem:[%s671 + $0x54] sm:$0xf]
        %v694 = vld [vmem:[%s671 + $0x58] sm:$0xf]
        %v695 = vld [vmem:[%s671 + $0x5c] sm:$0xf]
        %v696 = vld [vmem:[%s671 + $0x60] sm:$0xf]
        %v697 = vld [vmem:[%s671 + $0x64] sm:$0xf]
        %v698 = vld [vmem:[%s671 + $0x68] sm:$0xf]
        %v699 = vld [vmem:[%s671 + $0x6c] sm:$0xf]
        %v700 = vld [vmem:[%s671 + $0x70] sm:$0xf]
        %v701 = vld [vmem:[%s671 + $0x74] sm:$0xf]
        %v702 = vld [vmem:[%s671 + $0x78] sm:$0xf]
        %v703 = vld [vmem:[%s671 + $0x7c] sm:$0xf]
        %v704 = vld [vmem:[%s671 + $0x80] sm:$0xf]
        %v705 = vld [vmem:[%s671 + $0x84] sm:$0xf]
        %v706 = vld [vmem:[%s671 + $0x88] sm:$0xf]
        %v707 = vld [vmem:[%s671 + $0x8c] sm:$0xf]
        %v708 = vld [vmem:[%s671 + $0x90] sm:$0xf]
        %v709 = vld [vmem:[%s671 + $0x94] sm:$0xf]
        %v710 = vld [vmem:[%s671 + $0x98] sm:$0xf]
        %v711 = vld [vmem:[%s671 + $0x9c] sm:$0xf]
        %v712 = vld [vmem:[%s671 + $0xa0] sm:$0xf]
        %v713 = vld [vmem:[%s671 + $0xa4] sm:$0xf]
        %v714 = vld [vmem:[%s671 + $0xa8] sm:$0xf]
        %v715 = vld [vmem:[%s671 + $0xac] sm:$0xf]
        %v716 = vld [vmem:[%s671 + $0xb0] sm:$0xf]
        %v717 = vld [vmem:[%s671 + $0xb4] sm:$0xf]
        %v718 = vld [vmem:[%s671 + $0xb8] sm:$0xf]
        %v719 = vld [vmem:[%s671 + $0xbc] sm:$0xf]
        %v720 = vpack.c.b16 %v621, %v619
        %v721 = vpack.c.b16 %v665, %v663
        %v722 = vpack.c.b16 %v666, %v664
        %v723 = vpack.c.b16 %v625, %v623
        %v724 = vpack.c.b16 %v669, %v667
        %v725 = vpack.c.b16 %v670, %v668
        %v780 = vunpack.c.l.b16 %v672
        %v781 = vunpack.c.l.b16 %v673
        %v782 = vunpack.c.l.b16 %v674
        %v783 = vunpack.c.l.b16 %v675
        %v784 = vunpack.c.l.b16 %v676
        %v785 = vunpack.c.l.b16 %v677
        %v786 = vunpack.c.l.b16 %v678
        %v787 = vunpack.c.l.b16 %v679
        %v788 = vunpack.c.l.b16 %v680
        %v789 = vunpack.c.l.b16 %v681
        %v790 = vunpack.c.l.b16 %v682
        %v791 = vunpack.c.l.b16 %v683
        %v792 = vunpack.c.l.b16 %v684
        %v793 = vunpack.c.l.b16 %v685
        %v794 = vunpack.c.l.b16 %v686
        %v795 = vunpack.c.l.b16 %v687
        %v796 = vunpack.c.l.b16 %v688
        %v797 = vunpack.c.l.b16 %v689
        %v798 = vunpack.c.l.b16 %v690
        %v799 = vunpack.c.l.b16 %v691
        %v800 = vunpack.c.l.b16 %v692
        %v801 = vunpack.c.l.b16 %v693
        %v802 = vunpack.c.l.b16 %v694
        %v803 = vunpack.c.l.b16 %v695
        %v804 = vunpack.c.l.b16 %v696
        %v805 = vunpack.c.l.b16 %v697
        %v806 = vunpack.c.l.b16 %v698
        %v807 = vunpack.c.l.b16 %v699
        %v808 = vunpack.c.l.b16 %v700
        %v809 = vunpack.c.l.b16 %v701
        %v810 = vunpack.c.l.b16 %v702
        %v811 = vunpack.c.l.b16 %v703
        %v812 = vunpack.c.l.b16 %v704
        %v813 = vunpack.c.l.b16 %v705
        %v814 = vunpack.c.l.b16 %v706
        %v815 = vunpack.c.l.b16 %v707
        %v816 = vunpack.c.l.b16 %v708
        %v817 = vunpack.c.l.b16 %v709
        %v818 = vunpack.c.l.b16 %v710
        %v819 = vunpack.c.l.b16 %v711
        %v820 = vunpack.c.l.b16 %v712
        %v821 = vunpack.c.l.b16 %v713
        %v822 = vunpack.c.l.b16 %v714
        %v823 = vunpack.c.l.b16 %v715
        %v824 = vunpack.c.l.b16 %v716
        %v825 = vunpack.c.l.b16 %v717
        %v826 = vunpack.c.l.b16 %v718
        %v827 = vunpack.c.l.b16 %v719
        %v828 = vpack.c.b16 %v781, %v780
        %v829 = vpack.c.b16 %v783, %v782
        %v830 = vpack.c.b16 %v785, %v784
        %v831 = vpack.c.b16 %v787, %v786
        %v832 = vpack.c.b16 %v789, %v788
        %v833 = vpack.c.b16 %v791, %v790
        %v834 = vpack.c.b16 %v793, %v792
        %v835 = vpack.c.b16 %v795, %v794
        %v836 = vpack.c.b16 %v797, %v796
        %v837 = vpack.c.b16 %v799, %v798
        %v838 = vpack.c.b16 %v801, %v800
        %v839 = vpack.c.b16 %v803, %v802
        %v840 = vpack.c.b16 %v805, %v804
        %v841 = vpack.c.b16 %v807, %v806
        %v842 = vpack.c.b16 %v809, %v808
        %v843 = vpack.c.b16 %v811, %v810
        %v844 = vpack.c.b16 %v813, %v812
        %v845 = vpack.c.b16 %v815, %v814
        %v846 = vpack.c.b16 %v817, %v816
        %v847 = vpack.c.b16 %v819, %v818
        %v848 = vpack.c.b16 %v821, %v820
        %v849 = vpack.c.b16 %v823, %v822
        %v850 = vpack.c.b16 %v825, %v824
        %v851 = vpack.c.b16 %v827, %v826
        %876 = vmatprep.subr.bf16.mxu0 0
        %877 = vmatpush1.bf16.msra.mxu0 %v828
        %878 = vmatprep.subr.bf16.mxu0 0
        %879 = vmatpush1.bf16.msra.mxu0 %v829
        %880 = vmatprep.subr.bf16.mxu0 0
        %881 = vmatpush1.bf16.msra.mxu0 %v830
        %882 = vmatprep.subr.bf16.mxu0 0
        %883 = vmatpush1.bf16.msra.mxu0 %v831
        %884 = vmatprep.subr.bf16.mxu0 0
        %885 = vmatpush1.bf16.msra.mxu0 %v832
        %886 = vmatprep.subr.bf16.mxu0 0
        %887 = vmatpush1.bf16.msra.mxu0 %v833
        %888 = vmatprep.subr.bf16.mxu0 0
        %889 = vmatpush1.bf16.msra.mxu0 %v834
        %890 = vmatprep.subr.bf16.mxu0 0
        %891 = vmatpush1.bf16.msra.mxu0 %v835
        %892 = vmatprep.subr.bf16.mxu0 0
        %893 = vmatpush1.bf16.msra.mxu0 %v836
        %894 = vmatprep.subr.bf16.mxu0 0
        %895 = vmatpush1.bf16.msra.mxu0 %v837
        %896 = vmatprep.subr.bf16.mxu0 0
        %897 = vmatpush1.bf16.msra.mxu0 %v838
        %898 = vmatprep.subr.bf16.mxu0 0
        %899 = vmatpush1.bf16.msra.mxu0 %v839
        %900 = vmatprep.subr.bf16.mxu0 0
        %901 = vmatpush1.bf16.msra.mxu0 %v840
        %902 = vmatprep.subr.bf16.mxu0 0
        %903 = vmatpush1.bf16.msra.mxu0 %v841
        %904 = vmatprep.subr.bf16.mxu0 0
        %905 = vmatpush1.bf16.msra.mxu0 %v842
        %906 = vmatprep.subr.bf16.mxu0 0
        %907 = vmatpush1.bf16.msra.mxu0 %v843
        %908 = vmatprep.mubr.bf16.mxu0 %v721
        %909 = vmatmul.mubr.bf16.gmra.mrb[0].mxu0 %v720
        %v910 = vpop.f32.mrb[0].mxu0
        %v911 = vadd.f32 0.0, %v910
        %v912 = vpop.f32.mrb[0].mxu0
        %v913 = vpop.f32.mrb[0].mxu0
        %v914 = vadd.f32 0.0, %v913
        %v915 = vpop.f32.mrb[0].mxu0
        %916 = vmatprep.mubr.bf16.mxu0 %v724
        %917 = vmatmul.mubr.bf16.gmra.mrb[0].mxu0 %v723
        %v918 = vpop.f32.mrb[0].mxu0
        %v919 = vadd.f32 0.0, %v918
        %v920 = vpop.f32.mrb[0].mxu0
        %v921 = vpop.f32.mrb[0].mxu0
        %v922 = vadd.f32 0.0, %v921
        %v923 = vpop.f32.mrb[0].mxu0
        %924 = vdwg.mxu0
        %925 = vmatprep.subr.bf16.mxu0 0
        %926 = vmatpush1.bf16.msra.mxu0 %v844
        %927 = vmatprep.subr.bf16.mxu0 0
        %928 = vmatpush1.bf16.msra.mxu0 %v845
        %929 = vmatprep.subr.bf16.mxu0 0
        %930 = vmatpush1.bf16.msra.mxu0 %v846
        %931 = vmatprep.subr.bf16.mxu0 0
        %932 = vmatpush1.bf16.msra.mxu0 %v847
        %933 = vmatprep.subr.bf16.mxu0 0
        %934 = vmatpush1.bf16.msra.mxu0 %v848
        %935 = vmatprep.subr.bf16.mxu0 0
        %936 = vmatpush1.bf16.msra.mxu0 %v849
        %937 = vmatprep.subr.bf16.mxu0 0
        %938 = vmatpush1.bf16.msra.mxu0 %v850
        %939 = vmatprep.subr.bf16.mxu0 0
        %940 = vmatpush1.bf16.msra.mxu0 %v851
        %941 = vmatprep.subr.bf16.mxu0 0
        %942 = vmatpush1.bf16.msra.mxu0 0
        %943 = vmatprep.subr.bf16.mxu0 0
        %944 = vmatpush1.bf16.msra.mxu0 0
        %945 = vmatprep.subr.bf16.mxu0 0
        %946 = vmatpush1.bf16.msra.mxu0 0
        %947 = vmatprep.subr.bf16.mxu0 0
        %948 = vmatpush1.bf16.msra.mxu0 0
        %949 = vmatprep.subr.bf16.mxu0 0
        %950 = vmatpush1.bf16.msra.mxu0 0
        %951 = vmatprep.subr.bf16.mxu0 0
        %952 = vmatpush1.bf16.msra.mxu0 0
        %953 = vmatprep.subr.bf16.mxu0 0
        %954 = vmatpush1.bf16.msra.mxu0 0
        %955 = vmatprep.subr.bf16.mxu0 0
        %956 = vmatpush1.bf16.msra.mxu0 0
        %957 = vmatprep.mubr.bf16.mxu0 0
        %958 = vmatmul.mubr.bf16.gmra.mrb[0].mxu0 %v722
        %v959 = vpop.f32.mrb[0].mxu0
        %v960 = vadd.f32 %v911, %v959
        %v961 = vpop.f32.mrb[0].mxu0
        %v962 = vpop.f32.mrb[0].mxu0
        %v963 = vadd.f32 %v914, %v962
        %v964 = vpop.f32.mrb[0].mxu0
        %965 = vmatprep.mubr.bf16.mxu0 0
        %966 = vmatmul.mubr.bf16.gmra.mrb[0].mxu0 %v725
        %v967 = vpop.f32.mrb[0].mxu0
        %v968 = vadd.f32 %v919, %v967
        %v969 = vpop.f32.mrb[0].mxu0
        %v970 = vpop.f32.mrb[0].mxu0
        %v971 = vadd.f32 %v922, %v970
        %v972 = vpop.f32.mrb[0].mxu0
        %973 = vdwg.mxu0
        %v974 = vpack.c.b16 %v497, %v495
        %v975 = vpack.c.b16 %v541, %v539
        %v976 = vpack.c.b16 %v542, %v540
        %v977 = vpack.c.b16 %v501, %v499
        %v978 = vpack.c.b16 %v545, %v543
        %v979 = vpack.c.b16 %v546, %v544
        %v1034 = vunpack.c.l.b16 %v547
        %v1035 = vunpack.c.l.b16 %v548
        %v1036 = vunpack.c.l.b16 %v549
        %v1037 = vunpack.c.l.b16 %v550
        %v1038 = vunpack.c.l.b16 %v551
        %v1039 = vunpack.c.l.b16 %v552
        %v1040 = vunpack.c.l.b16 %v553
        %v1041 = vunpack.c.l.b16 %v554
        %v1042 = vunpack.c.l.b16 %v555
        %v1043 = vunpack.c.l.b16 %v556
        %v1044 = vunpack.c.l.b16 %v557
        %v1045 = vunpack.c.l.b16 %v558
        %v1046 = vunpack.c.l.b16 %v559
        %v1047 = vunpack.c.l.b16 %v560
        %v1048 = vunpack.c.l.b16 %v561
        %v1049 = vunpack.c.l.b16 %v562
        %v1050 = vunpack.c.l.b16 %v563
        %v1051 = vunpack.c.l.b16 %v564
        %v1052 = vunpack.c.l.b16 %v565
        %v1053 = vunpack.c.l.b16 %v566
        %v1054 = vunpack.c.l.b16 %v567
        %v1055 = vunpack.c.l.b16 %v568
        %v1056 = vunpack.c.l.b16 %v569
        %v1057 = vunpack.c.l.b16 %v570
        %v1058 = vunpack.c.l.b16 %v571
        %v1059 = vunpack.c.l.b16 %v572
        %v1060 = vunpack.c.l.b16 %v573
        %v1061 = vunpack.c.l.b16 %v574
        %v1062 = vunpack.c.l.b16 %v575
        %v1063 = vunpack.c.l.b16 %v576
        %v1064 = vunpack.c.l.b16 %v577
        %v1065 = vunpack.c.l.b16 %v578
        %v1066 = vunpack.c.l.b16 %v579
        %v1067 = vunpack.c.l.b16 %v580
        %v1068 = vunpack.c.l.b16 %v581
        %v1069 = vunpack.c.l.b16 %v582
        %v1070 = vunpack.c.l.b16 %v583
        %v1071 = vunpack.c.l.b16 %v584
        %v1072 = vunpack.c.l.b16 %v585
        %v1073 = vunpack.c.l.b16 %v586
        %v1074 = vunpack.c.l.b16 %v587
        %v1075 = vunpack.c.l.b16 %v588
        %v1076 = vunpack.c.l.b16 %v589
        %v1077 = vunpack.c.l.b16 %v590
        %v1078 = vunpack.c.l.b16 %v591
        %v1079 = vunpack.c.l.b16 %v592
        %v1080 = vunpack.c.l.b16 %v593
        %v1081 = vunpack.c.l.b16 %v594
        %v1082 = vpack.c.b16 %v1035, %v1034
        %v1083 = vpack.c.b16 %v1037, %v1036
        %v1084 = vpack.c.b16 %v1039, %v1038
        %v1085 = vpack.c.b16 %v1041, %v1040
        %v1086 = vpack.c.b16 %v1043, %v1042
        %v1087 = vpack.c.b16 %v1045, %v1044
        %v1088 = vpack.c.b16 %v1047, %v1046
        %v1089 = vpack.c.b16 %v1049, %v1048
        %v1090 = vpack.c.b16 %v1051, %v1050
        %v1091 = vpack.c.b16 %v1053, %v1052
        %v1092 = vpack.c.b16 %v1055, %v1054
        %v1093 = vpack.c.b16 %v1057, %v1056
        %v1094 = vpack.c.b16 %v1059, %v1058
        %v1095 = vpack.c.b16 %v1061, %v1060
        %v1096 = vpack.c.b16 %v1063, %v1062
        %v1097 = vpack.c.b16 %v1065, %v1064
        %v1098 = vpack.c.b16 %v1067, %v1066
        %v1099 = vpack.c.b16 %v1069, %v1068
        %v1100 = vpack.c.b16 %v1071, %v1070
        %v1101 = vpack.c.b16 %v1073, %v1072
        %v1102 = vpack.c.b16 %v1075, %v1074
        %v1103 = vpack.c.b16 %v1077, %v1076
        %v1104 = vpack.c.b16 %v1079, %v1078
        %v1105 = vpack.c.b16 %v1081, %v1080
        %1130 = vmatprep.subr.bf16.mxu0 0
        %1131 = vmatpush1.bf16.msra.mxu0 %v1082
        %1132 = vmatprep.subr.bf16.mxu0 0
        %1133 = vmatpush1.bf16.msra.mxu0 %v1083
        %1134 = vmatprep.subr.bf16.mxu0 0
        %1135 = vmatpush1.bf16.msra.mxu0 %v1084
        %1136 = vmatprep.subr.bf16.mxu0 0
        %1137 = vmatpush1.bf16.msra.mxu0 %v1085
        %1138 = vmatprep.subr.bf16.mxu0 0
        %1139 = vmatpush1.bf16.msra.mxu0 %v1086
        %1140 = vmatprep.subr.bf16.mxu0 0
        %1141 = vmatpush1.bf16.msra.mxu0 %v1087
        %1142 = vmatprep.subr.bf16.mxu0 0
        %1143 = vmatpush1.bf16.msra.mxu0 %v1088
        %1144 = vmatprep.subr.bf16.mxu0 0
        %1145 = vmatpush1.bf16.msra.mxu0 %v1089
        %1146 = vmatprep.subr.bf16.mxu0 0
        %1147 = vmatpush1.bf16.msra.mxu0 %v1090
        %1148 = vmatprep.subr.bf16.mxu0 0
        %1149 = vmatpush1.bf16.msra.mxu0 %v1091
        %1150 = vmatprep.subr.bf16.mxu0 0
        %1151 = vmatpush1.bf16.msra.mxu0 %v1092
        %1152 = vmatprep.subr.bf16.mxu0 0
        %1153 = vmatpush1.bf16.msra.mxu0 %v1093
        %1154 = vmatprep.subr.bf16.mxu0 0
        %1155 = vmatpush1.bf16.msra.mxu0 %v1094
        %1156 = vmatprep.subr.bf16.mxu0 0
        %1157 = vmatpush1.bf16.msra.mxu0 %v1095
        %1158 = vmatprep.subr.bf16.mxu0 0
        %1159 = vmatpush1.bf16.msra.mxu0 %v1096
        %1160 = vmatprep.subr.bf16.mxu0 0
        %1161 = vmatpush1.bf16.msra.mxu0 %v1097
        %1162 = vmatprep.mubr.bf16.mxu0 %v975
        %1163 = vmatmul.mubr.bf16.gmra.mrb[0].mxu0 %v974
        %v1164 = vpop.f32.mrb[0].mxu0
        %v1165 = vadd.f32 %v960, %v1164
        %v1166 = vpop.f32.mrb[0].mxu0
        %v1167 = vpop.f32.mrb[0].mxu0
        %v1168 = vadd.f32 %v963, %v1167
        %v1169 = vpop.f32.mrb[0].mxu0
        %1170 = vmatprep.mubr.bf16.mxu0 %v978
        %1171 = vmatmul.mubr.bf16.gmra.mrb[0].mxu0 %v977
        %v1172 = vpop.f32.mrb[0].mxu0
        %v1173 = vadd.f32 %v968, %v1172
        %v1174 = vpop.f32.mrb[0].mxu0
        %v1175 = vpop.f32.mrb[0].mxu0
        %v1176 = vadd.f32 %v971, %v1175
        %v1177 = vpop.f32.mrb[0].mxu0
        %1178 = vdwg.mxu0
        %1179 = vmatprep.subr.bf16.mxu0 0
        %1180 = vmatpush1.bf16.msra.mxu0 %v1098
        %1181 = vmatprep.subr.bf16.mxu0 0
        %1182 = vmatpush1.bf16.msra.mxu0 %v1099
        %1183 = vmatprep.subr.bf16.mxu0 0
        %1184 = vmatpush1.bf16.msra.mxu0 %v1100
        %1185 = vmatprep.subr.bf16.mxu0 0
        %1186 = vmatpush1.bf16.msra.mxu0 %v1101
        %1187 = vmatprep.subr.bf16.mxu0 0
        %1188 = vmatpush1.bf16.msra.mxu0 %v1102
        %1189 = vmatprep.subr.bf16.mxu0 0
        %1190 = vmatpush1.bf16.msra.mxu0 %v1103
        %1191 = vmatprep.subr.bf16.mxu0 0
        %1192 = vmatpush1.bf16.msra.mxu0 %v1104
        %1193 = vmatprep.subr.bf16.mxu0 0
        %1194 = vmatpush1.bf16.msra.mxu0 %v1105
        %1195 = vmatprep.subr.bf16.mxu0 0
        %1196 = vmatpush1.bf16.msra.mxu0 0
        %1197 = vmatprep.subr.bf16.mxu0 0
        %1198 = vmatpush1.bf16.msra.mxu0 0
        %1199 = vmatprep.subr.bf16.mxu0 0
        %1200 = vmatpush1.bf16.msra.mxu0 0
        %1201 = vmatprep.subr.bf16.mxu0 0
        %1202 = vmatpush1.bf16.msra.mxu0 0
        %1203 = vmatprep.subr.bf16.mxu0 0
        %1204 = vmatpush1.bf16.msra.mxu0 0
        %1205 = vmatprep.subr.bf16.mxu0 0
        %1206 = vmatpush1.bf16.msra.mxu0 0
        %1207 = vmatprep.subr.bf16.mxu0 0
        %1208 = vmatpush1.bf16.msra.mxu0 0
        %1209 = vmatprep.subr.bf16.mxu0 0
        %1210 = vmatpush1.bf16.msra.mxu0 0
        %1211 = vmatprep.mubr.bf16.mxu0 0
        %1212 = vmatmul.mubr.bf16.gmra.mrb[0].mxu0 %v976
        %v1213 = vpop.f32.mrb[0].mxu0
        %v1214 = vadd.f32 %v1165, %v1213
        %v1215 = vpop.f32.mrb[0].mxu0
        %v1216 = vpop.f32.mrb[0].mxu0
        %v1217 = vadd.f32 %v1168, %v1216
        %v1218 = vpop.f32.mrb[0].mxu0
        %1219 = vmatprep.mubr.bf16.mxu0 0
        %1220 = vmatmul.mubr.bf16.gmra.mrb[0].mxu0 %v979
        %v1221 = vpop.f32.mrb[0].mxu0
        %v1222 = vadd.f32 %v1173, %v1221
        %v1223 = vpop.f32.mrb[0].mxu0
        %v1224 = vpop.f32.mrb[0].mxu0
        %v1225 = vadd.f32 %v1176, %v1224
        %v1226 = vpop.f32.mrb[0].mxu0
        %1227 = vdwg.mxu0
        %s1228 = sadd.s32 %s469, 1
        %s1229 = smul.u32 %s1228, 2
        %s1230 = smul.addr %s1229, 4
        %s1231 = scalar_lea.vmem %s382, %s1230 [#allocation2]
        %v1232 = vld [vmem:[%s1231] sm:$0xf]
        %v1233 = vld [vmem:[%s1231 + $0x4] sm:$0x1]
        %v1234 = vld [vmem:[%s1231 + $0x8] sm:$0xf]
        %v1235 = vld [vmem:[%s1231 + $0xc] sm:$0x1]
        %v1236 = vld [vmem:[%s1231 + $0x10] sm:$0xf]
        %v1237 = vld [vmem:[%s1231 + $0x14] sm:$0x1]
        %v1238 = vld [vmem:[%s1231 + $0x18] sm:$0xf]
        %v1239 = vld [vmem:[%s1231 + $0x1c] sm:$0x1]
        %s1240 = smul.addr %s1229, 4
        %s1241 = scalar_lea.vmem %s391, %s1240 [#allocation5]
        %v1242 = vld [vmem:[%s1241] sm:$0xf]
        %v1243 = vld [vmem:[%s1241 + $0x8] sm:$0xf]
        %v1244 = vld [vmem:[%s1241 + $0x10] sm:$0xf]
        %v1245 = vld [vmem:[%s1241 + $0x18] sm:$0xf]
        %v1254 = vunpack.c.l.b16 %v1232
        %v1255 = vunpack.c.l.b16 %v1233
        %v1256 = vunpack.c.l.b16 %v1234
        %v1257 = vunpack.c.l.b16 %v1235
        %v1258 = vunpack.c.l.b16 %v1236
        %v1259 = vunpack.c.l.b16 %v1237
        %v1260 = vunpack.c.l.b16 %v1238
        %v1261 = vunpack.c.l.b16 %v1239
        %v1262 = vpack.c.b16 %v1255, %v1254
        %v1263 = vpack.c.b16 %v1257, %v1256
        %v1264 = vpack.c.b16 %v1259, %v1258
        %v1265 = vpack.c.b16 %v1261, %v1260
        %v1267 = vshrl.u32 %v1262, 16
        %v1269 = vshll.u32 %v1262, 16
        %v1271 = vrot.slane %v1269, 1
        %v1272 = vor.u32 %v1267, %v1271
        %v1274 = vshrl.u32 %v1263, 16
        %v1276 = vshll.u32 %v1263, 16
        %v1278 = vrot.slane %v1276, 1
        %v1279 = vor.u32 %v1274, %v1278
        %v1281 = vshrl.u32 %v1264, 16
        %v1283 = vshll.u32 %v1264, 16
        %v1285 = vrot.slane %v1283, 1
        %v1286 = vor.u32 %v1281, %v1285
        %v1288 = vshrl.u32 %v1265, 16
        %v1290 = vshll.u32 %v1265, 16
        %v1292 = vrot.slane %v1290, 1
        %v1293 = vor.u32 %v1288, %v1292
        %v1298 = vunpack.c.l.b16 %v1242
        %v1299 = vunpack.c.l.b16 %v1272
        %v1300 = vunpack.c.l.b16 %v1243
        %v1301 = vunpack.c.l.b16 %v1279
        %v1302 = vunpack.c.l.b16 %v1244
        %v1303 = vunpack.c.l.b16 %v1286
        %v1304 = vunpack.c.l.b16 %v1245
        %v1305 = vunpack.c.l.b16 %v1293
        %s1306 = scalar_lea.vmem [#allocation10], 384
        %v1307 = vld [vmem:[%s1306] sm:$0xf]
        %v1308 = vld [vmem:[%s1306 + $0x4] sm:$0xf]
        %v1309 = vld [vmem:[%s1306 + $0x8] sm:$0xf]
        %v1310 = vld [vmem:[%s1306 + $0xc] sm:$0xf]
        %v1311 = vld [vmem:[%s1306 + $0x10] sm:$0xf]
        %v1312 = vld [vmem:[%s1306 + $0x14] sm:$0xf]
        %v1313 = vld [vmem:[%s1306 + $0x18] sm:$0xf]
        %v1314 = vld [vmem:[%s1306 + $0x1c] sm:$0xf]
        %v1315 = vld [vmem:[%s1306 + $0x20] sm:$0xf]
        %v1316 = vld [vmem:[%s1306 + $0x24] sm:$0xf]
        %v1317 = vld [vmem:[%s1306 + $0x28] sm:$0xf]
        %v1318 = vld [vmem:[%s1306 + $0x2c] sm:$0xf]
        %v1319 = vld [vmem:[%s1306 + $0x30] sm:$0xf]
        %v1320 = vld [vmem:[%s1306 + $0x34] sm:$0xf]
        %v1321 = vld [vmem:[%s1306 + $0x38] sm:$0xf]
        %v1322 = vld [vmem:[%s1306 + $0x3c] sm:$0xf]
        %v1323 = vld [vmem:[%s1306 + $0x40] sm:$0xf]
        %v1324 = vld [vmem:[%s1306 + $0x44] sm:$0xf]
        %v1325 = vld [vmem:[%s1306 + $0x48] sm:$0xf]
        %v1326 = vld [vmem:[%s1306 + $0x4c] sm:$0xf]
        %v1327 = vld [vmem:[%s1306 + $0x50] sm:$0xf]
        %v1328 = vld [vmem:[%s1306 + $0x54] sm:$0xf]
        %v1329 = vld [vmem:[%s1306 + $0x58] sm:$0xf]
        %v1330 = vld [vmem:[%s1306 + $0x5c] sm:$0xf]
        %v1331 = vld [vmem:[%s1306 + $0x60] sm:$0xf]
        %v1332 = vld [vmem:[%s1306 + $0x64] sm:$0xf]
        %v1333 = vld [vmem:[%s1306 + $0x68] sm:$0xf]
        %v1334 = vld [vmem:[%s1306 + $0x6c] sm:$0xf]
        %v1335 = vld [vmem:[%s1306 + $0x70] sm:$0xf]
        %v1336 = vld [vmem:[%s1306 + $0x74] sm:$0xf]
        %v1337 = vld [vmem:[%s1306 + $0x78] sm:$0xf]
        %v1338 = vld [vmem:[%s1306 + $0x7c] sm:$0xf]
        %v1339 = vld [vmem:[%s1306 + $0x80] sm:$0xf]
        %v1340 = vld [vmem:[%s1306 + $0x84] sm:$0xf]
        %v1341 = vld [vmem:[%s1306 + $0x88] sm:$0xf]
        %v1342 = vld [vmem:[%s1306 + $0x8c] sm:$0xf]
        %v1343 = vld [vmem:[%s1306 + $0x90] sm:$0xf]
        %v1344 = vld [vmem:[%s1306 + $0x94] sm:$0xf]
        %v1345 = vld [vmem:[%s1306 + $0x98] sm:$0xf]
        %v1346 = vld [vmem:[%s1306 + $0x9c] sm:$0xf]
        %v1347 = vld [vmem:[%s1306 + $0xa0] sm:$0xf]
        %v1348 = vld [vmem:[%s1306 + $0xa4] sm:$0xf]
        %v1349 = vld [vmem:[%s1306 + $0xa8] sm:$0xf]
        %v1350 = vld [vmem:[%s1306 + $0xac] sm:$0xf]
        %v1351 = vld [vmem:[%s1306 + $0xb0] sm:$0xf]
        %v1352 = vld [vmem:[%s1306 + $0xb4] sm:$0xf]
        %v1353 = vld [vmem:[%s1306 + $0xb8] sm:$0xf]
        %v1354 = vld [vmem:[%s1306 + $0xbc] sm:$0xf]
        %v1355 = vpack.c.b16 %v1256, %v1254
        %v1356 = vpack.c.b16 %v1300, %v1298
        %v1357 = vpack.c.b16 %v1301, %v1299
        %v1358 = vpack.c.b16 %v1260, %v1258
        %v1359 = vpack.c.b16 %v1304, %v1302
        %v1360 = vpack.c.b16 %v1305, %v1303
        %v1415 = vunpack.c.l.b16 %v1307
        %v1416 = vunpack.c.l.b16 %v1308
        %v1417 = vunpack.c.l.b16 %v1309
        %v1418 = vunpack.c.l.b16 %v1310
        %v1419 = vunpack.c.l.b16 %v1311
        %v1420 = vunpack.c.l.b16 %v1312
        %v1421 = vunpack.c.l.b16 %v1313
        %v1422 = vunpack.c.l.b16 %v1314
        %v1423 = vunpack.c.l.b16 %v1315
        %v1424 = vunpack.c.l.b16 %v1316
        %v1425 = vunpack.c.l.b16 %v1317
        %v1426 = vunpack.c.l.b16 %v1318
        %v1427 = vunpack.c.l.b16 %v1319
        %v1428 = vunpack.c.l.b16 %v1320
        %v1429 = vunpack.c.l.b16 %v1321
        %v1430 = vunpack.c.l.b16 %v1322
        %v1431 = vunpack.c.l.b16 %v1323
        %v1432 = vunpack.c.l.b16 %v1324
        %v1433 = vunpack.c.l.b16 %v1325
        %v1434 = vunpack.c.l.b16 %v1326
        %v1435 = vunpack.c.l.b16 %v1327
        %v1436 = vunpack.c.l.b16 %v1328
        %v1437 = vunpack.c.l.b16 %v1329
        %v1438 = vunpack.c.l.b16 %v1330
        %v1439 = vunpack.c.l.b16 %v1331
        %v1440 = vunpack.c.l.b16 %v1332
        %v1441 = vunpack.c.l.b16 %v1333
        %v1442 = vunpack.c.l.b16 %v1334
        %v1443 = vunpack.c.l.b16 %v1335
        %v1444 = vunpack.c.l.b16 %v1336
        %v1445 = vunpack.c.l.b16 %v1337
        %v1446 = vunpack.c.l.b16 %v1338
        %v1447 = vunpack.c.l.b16 %v1339
        %v1448 = vunpack.c.l.b16 %v1340
        %v1449 = vunpack.c.l.b16 %v1341
        %v1450 = vunpack.c.l.b16 %v1342
        %v1451 = vunpack.c.l.b16 %v1343
        %v1452 = vunpack.c.l.b16 %v1344
        %v1453 = vunpack.c.l.b16 %v1345
        %v1454 = vunpack.c.l.b16 %v1346
        %v1455 = vunpack.c.l.b16 %v1347
        %v1456 = vunpack.c.l.b16 %v1348
        %v1457 = vunpack.c.l.b16 %v1349
        %v1458 = vunpack.c.l.b16 %v1350
        %v1459 = vunpack.c.l.b16 %v1351
        %v1460 = vunpack.c.l.b16 %v1352
        %v1461 = vunpack.c.l.b16 %v1353
        %v1462 = vunpack.c.l.b16 %v1354
        %v1463 = vpack.c.b16 %v1416, %v1415
        %v1464 = vpack.c.b16 %v1418, %v1417
        %v1465 = vpack.c.b16 %v1420, %v1419
        %v1466 = vpack.c.b16 %v1422, %v1421
        %v1467 = vpack.c.b16 %v1424, %v1423
        %v1468 = vpack.c.b16 %v1426, %v1425
        %v1469 = vpack.c.b16 %v1428, %v1427
        %v1470 = vpack.c.b16 %v1430, %v1429
        %v1471 = vpack.c.b16 %v1432, %v1431
        %v1472 = vpack.c.b16 %v1434, %v1433
        %v1473 = vpack.c.b16 %v1436, %v1435
        %v1474 = vpack.c.b16 %v1438, %v1437
        %v1475 = vpack.c.b16 %v1440, %v1439
        %v1476 = vpack.c.b16 %v1442, %v1441
        %v1477 = vpack.c.b16 %v1444, %v1443
        %v1478 = vpack.c.b16 %v1446, %v1445
        %v1479 = vpack.c.b16 %v1448, %v1447
        %v1480 = vpack.c.b16 %v1450, %v1449
        %v1481 = vpack.c.b16 %v1452, %v1451
        %v1482 = vpack.c.b16 %v1454, %v1453
        %v1483 = vpack.c.b16 %v1456, %v1455
        %v1484 = vpack.c.b16 %v1458, %v1457
        %v1485 = vpack.c.b16 %v1460, %v1459
        %v1486 = vpack.c.b16 %v1462, %v1461
        %1511 = vmatprep.subr.bf16.mxu0 0
        %1512 = vmatpush1.bf16.msra.mxu0 %v1463
        %1513 = vmatprep.subr.bf16.mxu0 0
        %1514 = vmatpush1.bf16.msra.mxu0 %v1464
        %1515 = vmatprep.subr.bf16.mxu0 0
        %1516 = vmatpush1.bf16.msra.mxu0 %v1465
        %1517 = vmatprep.subr.bf16.mxu0 0
        %1518 = vmatpush1.bf16.msra.mxu0 %v1466
        %1519 = vmatprep.subr.bf16.mxu0 0
        %1520 = vmatpush1.bf16.msra.mxu0 %v1467
        %1521 = vmatprep.subr.bf16.mxu0 0
        %1522 = vmatpush1.bf16.msra.mxu0 %v1468
        %1523 = vmatprep.subr.bf16.mxu0 0
        %1524 = vmatpush1.bf16.msra.mxu0 %v1469
        %1525 = vmatprep.subr.bf16.mxu0 0
        %1526 = vmatpush1.bf16.msra.mxu0 %v1470
        %1527 = vmatprep.subr.bf16.mxu0 0
        %1528 = vmatpush1.bf16.msra.mxu0 %v1471
        %1529 = vmatprep.subr.bf16.mxu0 0
        %1530 = vmatpush1.bf16.msra.mxu0 %v1472
        %1531 = vmatprep.subr.bf16.mxu0 0
        %1532 = vmatpush1.bf16.msra.mxu0 %v1473
        %1533 = vmatprep.subr.bf16.mxu0 0
        %1534 = vmatpush1.bf16.msra.mxu0 %v1474
        %1535 = vmatprep.subr.bf16.mxu0 0
        %1536 = vmatpush1.bf16.msra.mxu0 %v1475
        %1537 = vmatprep.subr.bf16.mxu0 0
        %1538 = vmatpush1.bf16.msra.mxu0 %v1476
        %1539 = vmatprep.subr.bf16.mxu0 0
        %1540 = vmatpush1.bf16.msra.mxu0 %v1477
        %1541 = vmatprep.subr.bf16.mxu0 0
        %1542 = vmatpush1.bf16.msra.mxu0 %v1478
        %1543 = vmatprep.mubr.bf16.mxu0 %v1356
        %1544 = vmatmul.mubr.bf16.gmra.mrb[0].mxu0 %v1355
        %v1545 = vpop.f32.mrb[0].mxu0
        %v1546 = vadd.f32 0.0, %v1545
        %v1547 = vpop.f32.mrb[0].mxu0
        %v1548 = vpop.f32.mrb[0].mxu0
        %v1549 = vadd.f32 0.0, %v1548
        %v1550 = vpop.f32.mrb[0].mxu0
        %1551 = vmatprep.mubr.bf16.mxu0 %v1359
        %1552 = vmatmul.mubr.bf16.gmra.mrb[0].mxu0 %v1358
        %v1553 = vpop.f32.mrb[0].mxu0
        %v1554 = vadd.f32 0.0, %v1553
        %v1555 = vpop.f32.mrb[0].mxu0
        %v1556 = vpop.f32.mrb[0].mxu0
        %v1557 = vadd.f32 0.0, %v1556
        %v1558 = vpop.f32.mrb[0].mxu0
        %1559 = vdwg.mxu0
        %1560 = vmatprep.subr.bf16.mxu0 0
        %1561 = vmatpush1.bf16.msra.mxu0 %v1479
        %1562 = vmatprep.subr.bf16.mxu0 0
        %1563 = vmatpush1.bf16.msra.mxu0 %v1480
        %1564 = vmatprep.subr.bf16.mxu0 0
        %1565 = vmatpush1.bf16.msra.mxu0 %v1481
        %1566 = vmatprep.subr.bf16.mxu0 0
        %1567 = vmatpush1.bf16.msra.mxu0 %v1482
        %1568 = vmatprep.subr.bf16.mxu0 0
        %1569 = vmatpush1.bf16.msra.mxu0 %v1483
        %1570 = vmatprep.subr.bf16.mxu0 0
        %1571 = vmatpush1.bf16.msra.mxu0 %v1484
        %1572 = vmatprep.subr.bf16.mxu0 0
        %1573 = vmatpush1.bf16.msra.mxu0 %v1485
        %1574 = vmatprep.subr.bf16.mxu0 0
        %1575 = vmatpush1.bf16.msra.mxu0 %v1486
        %1576 = vmatprep.subr.bf16.mxu0 0
        %1577 = vmatpush1.bf16.msra.mxu0 0
        %1578 = vmatprep.subr.bf16.mxu0 0
        %1579 = vmatpush1.bf16.msra.mxu0 0
        %1580 = vmatprep.subr.bf16.mxu0 0
        %1581 = vmatpush1.bf16.msra.mxu0 0
        %1582 = vmatprep.subr.bf16.mxu0 0
        %1583 = vmatpush1.bf16.msra.mxu0 0
        %1584 = vmatprep.subr.bf16.mxu0 0
        %1585 = vmatpush1.bf16.msra.mxu0 0
        %1586 = vmatprep.subr.bf16.mxu0 0
        %1587 = vmatpush1.bf16.msra.mxu0 0
        %1588 = vmatprep.subr.bf16.mxu0 0
        %1589 = vmatpush1.bf16.msra.mxu0 0
        %1590 = vmatprep.subr.bf16.mxu0 0
        %1591 = vmatpush1.bf16.msra.mxu0 0
        %1592 = vmatprep.mubr.bf16.mxu0 0
        %1593 = vmatmul.mubr.bf16.gmra.mrb[0].mxu0 %v1357
        %v1594 = vpop.f32.mrb[0].mxu0
        %v1595 = vadd.f32 %v1546, %v1594
        %v1596 = vpop.f32.mrb[0].mxu0
        %v1597 = vpop.f32.mrb[0].mxu0
        %v1598 = vadd.f32 %v1549, %v1597
        %v1599 = vpop.f32.mrb[0].mxu0
        %1600 = vmatprep.mubr.bf16.mxu0 0
        %1601 = vmatmul.mubr.bf16.gmra.mrb[0].mxu0 %v1360
        %v1602 = vpop.f32.mrb[0].mxu0
        %v1603 = vadd.f32 %v1554, %v1602
        %v1604 = vpop.f32.mrb[0].mxu0
        %v1605 = vpop.f32.mrb[0].mxu0
        %v1606 = vadd.f32 %v1557, %v1605
        %v1607 = vpop.f32.mrb[0].mxu0
        %1608 = vdwg.mxu0
        %v1609 = vadd.f32 %v1214, %v1595
        %v1610 = vadd.f32 %v1217, %v1598
        %v1611 = vadd.f32 %v1222, %v1603
        %v1612 = vadd.f32 %v1225, %v1606
        %v1613 = vld [vmem:[#allocation11] sm:$0x1]
        %v1615 = vlaneseq
        %v1616 = vshrl.u32 %v1615, 7
        %v1617 = vsub.s32 0, %v1616
        %v1618 = vrot.slane %v1613, %v1617
        %v1620 = vmul.f32 %v1609, %v1618
        %v1621 = vmul.f32 %v1610, %v1618
        %v1622 = vmul.f32 %v1611, %v1618
        %v1623 = vmul.f32 %v1612, %v1618
        %v1624 = vld [vmem:[#allocation13] sm:$0x1]
        %v1626 = vlaneseq
        %v1627 = vshrl.u32 %v1626, 7
        %v1628 = vsub.s32 0, %v1627
        %v1629 = vrot.slane %v1624, %v1628
        %v1631 = vadd.f32 %v1620, %v1629
        %v1632 = vadd.f32 %v1621, %v1629
        %v1633 = vadd.f32 %v1622, %v1629
        %v1634 = vadd.f32 %v1623, %v1629
        %v1635 = vmax.f32 %v1631, 0.0
        %v1636 = vmax.f32 %v1632, 0.0
        %v1637 = vmax.f32 %v1633, 0.0
        %v1638 = vmax.f32 %v1634, 0.0
        %v1639 = vpack.c.bf16 %v1635, %v1635
        %v1640 = vpack.c.bf16 %v1636, %v1636
        %v1641 = vpack.c.bf16 %v1637, %v1637
        %v1642 = vpack.c.bf16 %v1638, %v1638
        %1643 = vst [vmem:[%s466] sm:$0xf] %v1639
        %1644 = vst [vmem:[%s466 + $0x4] sm:$0xf] %v1640
        %1645 = vst [vmem:[%s466 + $0x8] sm:$0xf] %v1641
        %1646 = vst [vmem:[%s466 + $0xc] sm:$0xf] %v1642
        %s1647 = sand.u32 %s220, 1
        %s1648 = scalar_lea.sflag [#allocation4], %s1647
        %s1649 = sand.u32 %s220, 1
        %s1650 = smul.addr %s1649, 16
        %s1651 = scalar_lea.vmem [#allocation14], %s1650
        // Predicated region
        $region77: #{tpu_custom_call.1} parent=47 // pred_check
          %p1652 = pneg %p230
        $region78: #{tpu_custom_call.1} parent=47 // pred_check_branch
          %1654 = sbr.rel (%p1652) target = $region80
        $region79: #{tpu_custom_call.1} parent=47 // pred_region
          %s1655 = smul.u32 4, %s36
          %s1657 = ssub.s32 256, 256
          %1658 = vsyncadd %s1648, %s1657
          %s1659 = smul.addr %s35, 8
          %s1660 = sadd.s32 %s1655, %s1659
          %s1661 = smul.addr %s1660, 64
          %s1662 = scalar_lea.hbm %s7, %s1661
          %s1663 = sshll.u32 %s1651, 4
          %s1664 = int_to_ptr.vmem [resolvable:$true] %s1663
          %1669 = dma.vmem_to_hbm [thread:$0]  %s1664, 256, %s1662, %s1648, 64, 64, 4
        $region80: #{tpu_custom_call.1} parent=47 // pred_fallthru
          _
      $region48: #{tpu_custom_call.1} parent=5 // pred_fallthru
        _
      %p1670 = scmp.le.s32.totalorder 2, %s26
      // Predicated region
      $region81: #{tpu_custom_call.1} parent=5 // pred_check
        %p1671 = pneg %p1670
      $region82: #{tpu_custom_call.1} parent=5 // pred_check_branch
        %1673 = sbr.rel (%p1671) target = $region84
      $region83: #{tpu_custom_call.1} parent=5 // pred_region
        %s1674 = ssub.s32 %s26, 2
        // Predicated region
        $region85: #{tpu_custom_call.1} parent=83 // pred_check
          %p1675 = pneg %p236
        $region86: #{tpu_custom_call.1} parent=83 // pred_check_branch
          %1677 = sbr.rel (%p1675) target = $region88
        $region87: #{tpu_custom_call.1} parent=83 // pred_region
          %s1678 = sand.u32 %s221, 1
          %s1679 = scalar_lea.sflag [#allocation4], %s1678
          %s1680 = sand.u32 %s221, 1
          %s1681 = smul.addr %s1680, 16
          %s1682 = scalar_lea.vmem [#allocation14], %s1681
          %1683 = dma.done %s1679, 256
        $region88: #{tpu_custom_call.1} parent=83 // pred_fallthru
          _
      $region84: #{tpu_custom_call.1} parent=5 // pred_fallthru
        _
    $region6: #{tpu_custom_call.1} parent=1 // loop_footer
      %s30 = sadd.s32 1, %s26
    $region7: #{tpu_custom_call.1} parent=1 // loop_footer_branch
      %25 = sbr.rel target = $region3
    $region8: #{tpu_custom_call.1} parent=1 // loop_exit
      _
    %1684 = vsyncpa [#allocation3], 1
    %s1685 = scalar_lea.sflag [#allocation3], 1
    %1686 = vsyncpa %s1685, 1
    %1687 = vsyncpa [#allocation6], 1
    %s1688 = scalar_lea.sflag [#allocation6], 1
    %1689 = vsyncpa %s1688, 1
    %1690 = vsyncpa [#allocation9], 1
    %s1691 = scalar_lea.sflag [#allocation9], 1
    %1692 = vsyncpa %s1691, 1
    %1693 = vsyncpa [#allocation12], 1
    %1694 = vsyncpa [#allocation4], 1
    %s1695 = scalar_lea.sflag [#allocation4], 1
    %1696 = vsyncpa %s1695, 1

</llo_original>
